<compile_context>
chip_gen: v7x
topology: tpu7x:2x2x1
jax: 0.10.0
libtpu: 0.0.40
codegen_flags: <defaults>
</compile_context>

<pallas_src>
import math

import jax
import jax.numpy as jnp
from jax.experimental import pallas as pl
from jax.experimental.pallas import tpu as pltpu

N_EMBD = 32
N_HEAD = 4
HEAD_DIM = N_EMBD // N_HEAD
LN_EPS = 1e-5          # nn.LayerNorm default
MASK_NEG = -1e30       # finite stand-in for -inf (avoids inf-inf -> NaN)


def _norm(x):
    """LayerNorm without affine (affine folded into downstream weights host-side)."""
    mu = jnp.mean(x, axis=-1, keepdims=True)
    var = jnp.mean((x - mu) ** 2, axis=-1, keepdims=True)
    return (x - mu) * jax.lax.rsqrt(var + LN_EPS)


def bert_block_kernel(x_ref, bias_ref, mmul_ref,
                      wqkv_ref, bqkv_ref,
                      wp2_ref, bp2_ref,
                      w1_ref, b1_ref, w2_ref, b2_ref,
                      out_ref):
    B, T, _ = bias_ref.shape
    C = x_ref.shape[-1]

    x = x_ref[...]              # (B*T, C)
    bias = bias_ref[...]        # (B, T, T) additive mask bias (0 / -1e30)
    mmul = mmul_ref[...]        # (B, T, T) 0/1 post-softmax multiplier

    # ---------------- attention branch: attn(ln1(x)) ----------------
    # ln1 affine and the 1/sqrt(D) q-scale are pre-folded into wqkv/bqkv.
    h = _norm(x)
    qkv = jnp.dot(h, wqkv_ref[...],
                  preferred_element_type=jnp.float32) + bqkv_ref[...]    # (B*T, 3C)
    q = qkv[:, 0 * C:1 * C].reshape(B, T, C)     # leading-dim split only (cheap)
    k = qkv[:, 1 * C:2 * C].reshape(B, T, C)
    v = qkv[:, 2 * C:3 * C].reshape(B, T, C)

    head_outs = []
    for hh in range(N_HEAD):                     # static unroll; each head is B-batched
        sl = slice(hh * HEAD_DIM, (hh + 1) * HEAD_DIM)
        qh, kh, vh = q[..., sl], k[..., sl], v[..., sl]                  # (B, T, D)
        att = jnp.einsum('btd,bsd->bts', qh, kh,
                         preferred_element_type=jnp.float32) + bias
        att = att - jnp.max(att, axis=-1, keepdims=True)
        e = jnp.exp(att)
        p = e * pl.reciprocal(jnp.sum(e, axis=-1, keepdims=True), approx=True)
        p = p * mmul                             # reference's post-softmax masked_fill(0)
        # attn_drop: identity at inference
        head_outs.append(jnp.einsum('bts,bsd->btd', p, vh,
                                    preferred_element_type=jnp.float32))
    y = jnp.concatenate(head_outs, axis=-1).reshape(B * T, C)            # (B*T, C)

    # Double proj (resid_pdrop-not-None quirk) pre-folded into a single matmul.
    y = jnp.dot(y, wp2_ref[...], preferred_element_type=jnp.float32) + bp2_ref[...]
    x1 = x + y                                   # first residual

    # ---------------- MLP branch: mlp(ln2(x)) ----------------
    h2 = _norm(x1)                               # ln2 affine pre-folded into w1/b1
    m = jnp.dot(h2, w1_ref[...], preferred_element_type=jnp.float32) + b1_ref[...]
    m = 0.5 * m * (1.0 + jax.lax.erf(m * (1.0 / math.sqrt(2.0))))        # exact GELU
    m = jnp.dot(m, w2_ref[...], preferred_element_type=jnp.float32) + b2_ref[...]
    # embd_pdrop: identity at inference
    out_ref[...] = (x1 + m).astype(out_ref.dtype)


def pack_params(params):
    """One-time host-side weight packing (hoisted out of the per-call path)."""
    C = params["wq"].shape[0]
    scale = 1.0 / math.sqrt(HEAD_DIM)

    # Fuse q/k/v into one (C, 3C) projection; fold the attention scale into q.
    wqkv = jnp.concatenate([params["wq"] * scale, params["wk"], params["wv"]], axis=1)
    bqkv = jnp.concatenate([params["bq"] * scale, params["bk"], params["bv"]], axis=1)

    # Fold ln1 affine:  (xn*g + b) @ W + bias == xn @ (g[:,None]*W) + (b @ W + bias)
    wqkv_f = params["ln1_g"].reshape(C, 1) * wqkv
    bqkv_f = params["ln1_b"] @ wqkv + bqkv

    # Fold the intentional double proj:  (y@wp+bp)@wp + bp == y@(wp@wp) + (bp@wp + bp)
    wp2 = params["wp"] @ params["wp"]
    bp2 = params["bp"] @ params["wp"] + params["bp"]

    # Fold ln2 affine into the first MLP linear.
    w1_f = params["ln2_g"].reshape(C, 1) * params["w1"]
    b1_f = params["ln2_b"] @ params["w1"] + params["b1"]

    return (wqkv_f, bqkv_f, wp2, bp2, w1_f, b1_f, params["w2"], params["b2"])


def bert_block(x, att_mask, packed):
    B, T, C = x.shape
    assert C == N_EMBD

    # Precompute the additive bias / post-softmax multiplier outside the kernel
    # (tiny (B,T,T) arrays; removes compare+where VPU work and the -inf NaN hazard).
    mask = att_mask.reshape(B, T, T).astype(jnp.float32)     # 1 = attend, 0 = masked
    neg_bias = jnp.where(mask == 0.0, MASK_NEG, 0.0).astype(jnp.float32)

    x_flat = x.reshape(B * T, C)                             # single sublane-dense tile
    vmem = pl.BlockSpec(memory_space=pltpu.MemorySpace.VMEM)

    out_flat = pl.pallas_call(
        bert_block_kernel,
        out_shape=jax.ShapeDtypeStruct((B * T, C), x.dtype),
        in_specs=[vmem] * 11,        # every operand explicitly pinned to VMEM
        out_specs=vmem,
        # No grid: whole problem in one invocation (B*T=16, C=32).  For large B/T,
        # add a parallel batch grid axis (v7x megacore) + flash-style KV tiling.
    )(x_flat, neg_bias, mask, *packed)
    return out_flat.reshape(B, T, C)


def init_params(key, n_embd):
    # Deterministic synthetic init.  Linear weights stored as (in, out) so the kernel
    # computes x @ W + b (equivalent to PyTorch's x @ W_torch.T + b).
    ks = jax.random.split(key, 12)

    def lin(kw, kb, fan_in, fan_out):
        w = jax.random.normal(kw, (fan_in, fan_out), jnp.float32) * 0.02
        b = jax.random.normal(kb, (1, fan_out), jnp.float32) * 0.02
        return w, b

    wq, bq = lin(ks[0], ks[1], n_embd, n_embd)
    wk, bk = lin(ks[2], ks[3], n_embd, n_embd)
    wv, bv = lin(ks[4], ks[5], n_embd, n_embd)
    wp, bp = lin(ks[6], ks[7], n_embd, n_embd)
    w1, b1 = lin(ks[8], ks[9], n_embd, 4 * n_embd)
    w2, b2 = lin(ks[10], ks[11], 4 * n_embd, n_embd)
    return {
        "ln1_g": jnp.ones((1, n_embd), jnp.float32),
        "ln1_b": jnp.zeros((1, n_embd), jnp.float32),
        "wq": wq, "bq": bq, "wk": wk, "bk": bk, "wv": wv, "bv": bv,
        "wp": wp, "bp": bp,
        "ln2_g": jnp.ones((1, n_embd), jnp.float32),
        "ln2_b": jnp.zeros((1, n_embd), jnp.float32),
        "w1": w1, "b1": b1, "w2": w2, "b2": b2,
    }


if __name__ == "__main__":
    B, T, C = 2, 8, N_EMBD

    root = jax.random.PRNGKey(0)
    k_x, k_p = jax.random.split(root)

    x = jax.random.normal(k_x, (B, T, C), jnp.float32)

    # att_mask: 1 = attend, 0 = masked.  Batch 1 masks out the last two key positions.
    att_mask = jnp.ones((B, 1, T, T), jnp.float32)
    att_mask = att_mask.at[1, :, :, T - 2:].set(0.0)

    params = init_params(k_p, C)
    packed = pack_params(params)     # one-time packing, hoisted out of the call path

    out = bert_block(x, att_mask, packed)
    out = jax.block_until_ready(out)
    assert out.shape == (B, T, C)
    print("KERNEL_OK")
</pallas_src>

<mosaic_0001>
module attributes {stable_mosaic.version = 11 : i64} {
  func.func @bert_block_kernel(%arg0: memref<16x32xf32, #tpu.memory_space<vmem>>, %arg1: memref<2x8x8xf32, #tpu.memory_space<vmem>>, %arg2: memref<2x8x8xf32, #tpu.memory_space<vmem>>, %arg3: memref<32x96xf32, #tpu.memory_space<vmem>>, %arg4: memref<1x96xf32, #tpu.memory_space<vmem>>, %arg5: memref<32x32xf32, #tpu.memory_space<vmem>>, %arg6: memref<1x32xf32, #tpu.memory_space<vmem>>, %arg7: memref<32x128xf32, #tpu.memory_space<vmem>>, %arg8: memref<1x128xf32, #tpu.memory_space<vmem>>, %arg9: memref<128x32xf32, #tpu.memory_space<vmem>>, %arg10: memref<1x32xf32, #tpu.memory_space<vmem>>, %arg11: memref<16x32xf32, #tpu.memory_space<vmem>>) attributes {dimension_semantics = [], scalar_prefetch = 0 : i64, scratch_operands = 0 : i64, tpu.core_type = #tpu.core_type<tc>} {
    %c0 = arith.constant 0 : index
    %c0_0 = arith.constant 0 : index
    %0 = vector.load %arg0[%c0, %c0_0] : memref<16x32xf32, #tpu.memory_space<vmem>>, vector<16x32xf32>
    %c0_1 = arith.constant 0 : index
    %c0_2 = arith.constant 0 : index
    %c0_3 = arith.constant 0 : index
    %1 = vector.load %arg1[%c0_1, %c0_2, %c0_3] : memref<2x8x8xf32, #tpu.memory_space<vmem>>, vector<2x8x8xf32>
    %c0_4 = arith.constant 0 : index
    %c0_5 = arith.constant 0 : index
    %c0_6 = arith.constant 0 : index
    %2 = vector.load %arg2[%c0_4, %c0_5, %c0_6] : memref<2x8x8xf32, #tpu.memory_space<vmem>>, vector<2x8x8xf32>
    %cst = arith.constant dense<0.000000e+00> : vector<16xf32>
    %3 = vector.multi_reduction <add>, %0, %cst [1] : vector<16x32xf32> to vector<16xf32>
    %4 = vector.shape_cast %3 : vector<16xf32> to vector<16x1xf32>
    %cst_7 = arith.constant 3.200000e+01 : f32
    %5 = vector.broadcast %cst_7 : f32 to vector<16x1xf32>
    %6 = arith.divf %4, %5 : vector<16x1xf32>
    %7 = vector.broadcast %6 : vector<16x1xf32> to vector<16x32xf32>
    %8 = arith.subf %0, %7 : vector<16x32xf32>
    %9 = arith.mulf %8, %8 : vector<16x32xf32>
    %cst_8 = arith.constant dense<0.000000e+00> : vector<16xf32>
    %10 = vector.multi_reduction <add>, %9, %cst_8 [1] : vector<16x32xf32> to vector<16xf32>
    %11 = vector.shape_cast %10 : vector<16xf32> to vector<16x1xf32>
    %cst_9 = arith.constant 3.200000e+01 : f32
    %12 = vector.broadcast %cst_9 : f32 to vector<16x1xf32>
    %13 = arith.divf %11, %12 : vector<16x1xf32>
    %14 = vector.broadcast %6 : vector<16x1xf32> to vector<16x32xf32>
    %15 = arith.subf %0, %14 : vector<16x32xf32>
    %cst_10 = arith.constant 9.99999974E-6 : f32
    %16 = vector.broadcast %cst_10 : f32 to vector<16x1xf32>
    %17 = arith.addf %13, %16 : vector<16x1xf32>
    %18 = math.rsqrt %17 : vector<16x1xf32>
    %19 = vector.broadcast %18 : vector<16x1xf32> to vector<16x32xf32>
    %20 = arith.mulf %15, %19 : vector<16x32xf32>
    %c0_11 = arith.constant 0 : index
    %c0_12 = arith.constant 0 : index
    %21 = vector.load %arg3[%c0_11, %c0_12] : memref<32x96xf32, #tpu.memory_space<vmem>>, vector<32x96xf32>
    %cst_13 = arith.constant dense<0.000000e+00> : vector<16x96xf32>
    %22 = tpu.matmul %20, %21, %cst_13 {dimension_numbers = #tpu.dot_dimension_numbers<[1], [0], [0], [1], [0, 0, 1, 1], [], []>} : vector<16x32xf32>, vector<32x96xf32>, vector<16x96xf32> -> vector<16x96xf32>
    %c0_14 = arith.constant 0 : index
    %c0_15 = arith.constant 0 : index
    %23 = vector.load %arg4[%c0_14, %c0_15] : memref<1x96xf32, #tpu.memory_space<vmem>>, vector<1x96xf32>
    %24 = vector.broadcast %23 : vector<1x96xf32> to vector<16x96xf32>
    %25 = arith.addf %22, %24 : vector<16x96xf32>
    %26 = vector.extract_strided_slice %25 {offsets = [0, 0], sizes = [16, 32], strides = [1, 1]} : vector<16x96xf32> to vector<16x32xf32>
    %27 = vector.shape_cast %26 : vector<16x32xf32> to vector<2x8x32xf32>
    %28 = vector.extract_strided_slice %25 {offsets = [0, 32], sizes = [16, 32], strides = [1, 1]} : vector<16x96xf32> to vector<16x32xf32>
    %29 = vector.shape_cast %28 : vector<16x32xf32> to vector<2x8x32xf32>
    %30 = vector.extract_strided_slice %25 {offsets = [0, 64], sizes = [16, 32], strides = [1, 1]} : vector<16x96xf32> to vector<16x32xf32>
    %31 = vector.shape_cast %30 : vector<16x32xf32> to vector<2x8x32xf32>
    %32 = vector.extract_strided_slice %27 {offsets = [0, 0, 0], sizes = [2, 8, 8], strides = [1, 1, 1]} : vector<2x8x32xf32> to vector<2x8x8xf32>
    %33 = vector.extract_strided_slice %29 {offsets = [0, 0, 0], sizes = [2, 8, 8], strides = [1, 1, 1]} : vector<2x8x32xf32> to vector<2x8x8xf32>
    %34 = vector.extract_strided_slice %31 {offsets = [0, 0, 0], sizes = [2, 8, 8], strides = [1, 1, 1]} : vector<2x8x32xf32> to vector<2x8x8xf32>
    "tpu.trace_start"() <{level = 10 : i32, message = "btd,bsd->bts"}> : () -> ()
    %cst_16 = arith.constant dense<0.000000e+00> : vector<2x8x8xf32>
    %35 = tpu.matmul %32, %33, %cst_16 {dimension_numbers = #tpu.dot_dimension_numbers<[2], [2], [1], [1], [0, 0, 0, 1, 1, 1], [0], [0]>} : vector<2x8x8xf32>, vector<2x8x8xf32>, vector<2x8x8xf32> -> vector<2x8x8xf32>
    "tpu.trace_stop"() : () -> ()
    %36 = arith.addf %35, %1 : vector<2x8x8xf32>
    %cst_17 = arith.constant dense<0xFF800000> : vector<2x8xf32>
    %37 = vector.multi_reduction <maximumf>, %36, %cst_17 [2] : vector<2x8x8xf32> to vector<2x8xf32>
    %38 = vector.shape_cast %37 : vector<2x8xf32> to vector<2x8x1xf32>
    %39 = vector.broadcast %38 : vector<2x8x1xf32> to vector<2x8x8xf32>
    %40 = arith.subf %36, %39 : vector<2x8x8xf32>
    %41 = math.exp %40 : vector<2x8x8xf32>
    %cst_18 = arith.constant dense<0.000000e+00> : vector<2x8xf32>
    %42 = vector.multi_reduction <add>, %41, %cst_18 [2] : vector<2x8x8xf32> to vector<2x8xf32>
    %43 = vector.shape_cast %42 : vector<2x8xf32> to vector<2x8x1xf32>
    %44 = tpu.reciprocal %43 {approx = true} : vector<2x8x1xf32> -> vector<2x8x1xf32>
    %45 = vector.broadcast %44 : vector<2x8x1xf32> to vector<2x8x8xf32>
    %46 = arith.mulf %41, %45 : vector<2x8x8xf32>
    %47 = arith.mulf %46, %2 : vector<2x8x8xf32>
    "tpu.trace_start"() <{level = 10 : i32, message = "bts,bsd->btd"}> : () -> ()
    %cst_19 = arith.constant dense<0.000000e+00> : vector<2x8x8xf32>
    %48 = tpu.matmul %47, %34, %cst_19 {dimension_numbers = #tpu.dot_dimension_numbers<[2], [1], [1], [2], [0, 0, 0, 1, 1, 2], [0], [0]>} : vector<2x8x8xf32>, vector<2x8x8xf32>, vector<2x8x8xf32> -> vector<2x8x8xf32>
    "tpu.trace_stop"() : () -> ()
    %49 = vector.extract_strided_slice %27 {offsets = [0, 0, 8], sizes = [2, 8, 8], strides = [1, 1, 1]} : vector<2x8x32xf32> to vector<2x8x8xf32>
    %50 = vector.extract_strided_slice %29 {offsets = [0, 0, 8], sizes = [2, 8, 8], strides = [1, 1, 1]} : vector<2x8x32xf32> to vector<2x8x8xf32>
    %51 = vector.extract_strided_slice %31 {offsets = [0, 0, 8], sizes = [2, 8, 8], strides = [1, 1, 1]} : vector<2x8x32xf32> to vector<2x8x8xf32>
    "tpu.trace_start"() <{level = 10 : i32, message = "btd,bsd->bts"}> : () -> ()
    %cst_20 = arith.constant dense<0.000000e+00> : vector<2x8x8xf32>
    %52 = tpu.matmul %49, %50, %cst_20 {dimension_numbers = #tpu.dot_dimension_numbers<[2], [2], [1], [1], [0, 0, 0, 1, 1, 1], [0], [0]>} : vector<2x8x8xf32>, vector<2x8x8xf32>, vector<2x8x8xf32> -> vector<2x8x8xf32>
    "tpu.trace_stop"() : () -> ()
    %53 = arith.addf %52, %1 : vector<2x8x8xf32>
    %cst_21 = arith.constant dense<0xFF800000> : vector<2x8xf32>
    %54 = vector.multi_reduction <maximumf>, %53, %cst_21 [2] : vector<2x8x8xf32> to vector<2x8xf32>
    %55 = vector.shape_cast %54 : vector<2x8xf32> to vector<2x8x1xf32>
    %56 = vector.broadcast %55 : vector<2x8x1xf32> to vector<2x8x8xf32>
    %57 = arith.subf %53, %56 : vector<2x8x8xf32>
    %58 = math.exp %57 : vector<2x8x8xf32>
    %cst_22 = arith.constant dense<0.000000e+00> : vector<2x8xf32>
    %59 = vector.multi_reduction <add>, %58, %cst_22 [2] : vector<2x8x8xf32> to vector<2x8xf32>
    %60 = vector.shape_cast %59 : vector<2x8xf32> to vector<2x8x1xf32>
    %61 = tpu.reciprocal %60 {approx = true} : vector<2x8x1xf32> -> vector<2x8x1xf32>
    %62 = vector.broadcast %61 : vector<2x8x1xf32> to vector<2x8x8xf32>
    %63 = arith.mulf %58, %62 : vector<2x8x8xf32>
    %64 = arith.mulf %63, %2 : vector<2x8x8xf32>
    "tpu.trace_start"() <{level = 10 : i32, message = "bts,bsd->btd"}> : () -> ()
    %cst_23 = arith.constant dense<0.000000e+00> : vector<2x8x8xf32>
    %65 = tpu.matmul %64, %51, %cst_23 {dimension_numbers = #tpu.dot_dimension_numbers<[2], [1], [1], [2], [0, 0, 0, 1, 1, 2], [0], [0]>} : vector<2x8x8xf32>, vector<2x8x8xf32>, vector<2x8x8xf32> -> vector<2x8x8xf32>
    "tpu.trace_stop"() : () -> ()
    %66 = vector.extract_strided_slice %27 {offsets = [0, 0, 16], sizes = [2, 8, 8], strides = [1, 1, 1]} : vector<2x8x32xf32> to vector<2x8x8xf32>
    %67 = vector.extract_strided_slice %29 {offsets = [0, 0, 16], sizes = [2, 8, 8], strides = [1, 1, 1]} : vector<2x8x32xf32> to vector<2x8x8xf32>
    %68 = vector.extract_strided_slice %31 {offsets = [0, 0, 16], sizes = [2, 8, 8], strides = [1, 1, 1]} : vector<2x8x32xf32> to vector<2x8x8xf32>
    "tpu.trace_start"() <{level = 10 : i32, message = "btd,bsd->bts"}> : () -> ()
    %cst_24 = arith.constant dense<0.000000e+00> : vector<2x8x8xf32>
    %69 = tpu.matmul %66, %67, %cst_24 {dimension_numbers = #tpu.dot_dimension_numbers<[2], [2], [1], [1], [0, 0, 0, 1, 1, 1], [0], [0]>} : vector<2x8x8xf32>, vector<2x8x8xf32>, vector<2x8x8xf32> -> vector<2x8x8xf32>
    "tpu.trace_stop"() : () -> ()
    %70 = arith.addf %69, %1 : vector<2x8x8xf32>
    %cst_25 = arith.constant dense<0xFF800000> : vector<2x8xf32>
    %71 = vector.multi_reduction <maximumf>, %70, %cst_25 [2] : vector<2x8x8xf32> to vector<2x8xf32>
    %72 = vector.shape_cast %71 : vector<2x8xf32> to vector<2x8x1xf32>
    %73 = vector.broadcast %72 : vector<2x8x1xf32> to vector<2x8x8xf32>
    %74 = arith.subf %70, %73 : vector<2x8x8xf32>
    %75 = math.exp %74 : vector<2x8x8xf32>
    %cst_26 = arith.constant dense<0.000000e+00> : vector<2x8xf32>
    %76 = vector.multi_reduction <add>, %75, %cst_26 [2] : vector<2x8x8xf32> to vector<2x8xf32>
    %77 = vector.shape_cast %76 : vector<2x8xf32> to vector<2x8x1xf32>
    %78 = tpu.reciprocal %77 {approx = true} : vector<2x8x1xf32> -> vector<2x8x1xf32>
    %79 = vector.broadcast %78 : vector<2x8x1xf32> to vector<2x8x8xf32>
    %80 = arith.mulf %75, %79 : vector<2x8x8xf32>
    %81 = arith.mulf %80, %2 : vector<2x8x8xf32>
    "tpu.trace_start"() <{level = 10 : i32, message = "bts,bsd->btd"}> : () -> ()
    %cst_27 = arith.constant dense<0.000000e+00> : vector<2x8x8xf32>
    %82 = tpu.matmul %81, %68, %cst_27 {dimension_numbers = #tpu.dot_dimension_numbers<[2], [1], [1], [2], [0, 0, 0, 1, 1, 2], [0], [0]>} : vector<2x8x8xf32>, vector<2x8x8xf32>, vector<2x8x8xf32> -> vector<2x8x8xf32>
    "tpu.trace_stop"() : () -> ()
    %83 = vector.extract_strided_slice %27 {offsets = [0, 0, 24], sizes = [2, 8, 8], strides = [1, 1, 1]} : vector<2x8x32xf32> to vector<2x8x8xf32>
    %84 = vector.extract_strided_slice %29 {offsets = [0, 0, 24], sizes = [2, 8, 8], strides = [1, 1, 1]} : vector<2x8x32xf32> to vector<2x8x8xf32>
    %85 = vector.extract_strided_slice %31 {offsets = [0, 0, 24], sizes = [2, 8, 8], strides = [1, 1, 1]} : vector<2x8x32xf32> to vector<2x8x8xf32>
    "tpu.trace_start"() <{level = 10 : i32, message = "btd,bsd->bts"}> : () -> ()
    %cst_28 = arith.constant dense<0.000000e+00> : vector<2x8x8xf32>
    %86 = tpu.matmul %83, %84, %cst_28 {dimension_numbers = #tpu.dot_dimension_numbers<[2], [2], [1], [1], [0, 0, 0, 1, 1, 1], [0], [0]>} : vector<2x8x8xf32>, vector<2x8x8xf32>, vector<2x8x8xf32> -> vector<2x8x8xf32>
    "tpu.trace_stop"() : () -> ()
    %87 = arith.addf %86, %1 : vector<2x8x8xf32>
    %cst_29 = arith.constant dense<0xFF800000> : vector<2x8xf32>
    %88 = vector.multi_reduction <maximumf>, %87, %cst_29 [2] : vector<2x8x8xf32> to vector<2x8xf32>
    %89 = vector.shape_cast %88 : vector<2x8xf32> to vector<2x8x1xf32>
    %90 = vector.broadcast %89 : vector<2x8x1xf32> to vector<2x8x8xf32>
    %91 = arith.subf %87, %90 : vector<2x8x8xf32>
    %92 = math.exp %91 : vector<2x8x8xf32>
    %cst_30 = arith.constant dense<0.000000e+00> : vector<2x8xf32>
    %93 = vector.multi_reduction <add>, %92, %cst_30 [2] : vector<2x8x8xf32> to vector<2x8xf32>
    %94 = vector.shape_cast %93 : vector<2x8xf32> to vector<2x8x1xf32>
    %95 = tpu.reciprocal %94 {approx = true} : vector<2x8x1xf32> -> vector<2x8x1xf32>
    %96 = vector.broadcast %95 : vector<2x8x1xf32> to vector<2x8x8xf32>
    %97 = arith.mulf %92, %96 : vector<2x8x8xf32>
    %98 = arith.mulf %97, %2 : vector<2x8x8xf32>
    "tpu.trace_start"() <{level = 10 : i32, message = "bts,bsd->btd"}> : () -> ()
    %cst_31 = arith.constant dense<0.000000e+00> : vector<2x8x8xf32>
    %99 = tpu.matmul %98, %85, %cst_31 {dimension_numbers = #tpu.dot_dimension_numbers<[2], [1], [1], [2], [0, 0, 0, 1, 1, 2], [0], [0]>} : vector<2x8x8xf32>, vector<2x8x8xf32>, vector<2x8x8xf32> -> vector<2x8x8xf32>
    "tpu.trace_stop"() : () -> ()
    %100 = tpu.concatenate %48, %65, %82, %99 in 2 : vector<2x8x8xf32>, vector<2x8x8xf32>, vector<2x8x8xf32>, vector<2x8x8xf32> -> vector<2x8x32xf32>
    %101 = vector.shape_cast %100 : vector<2x8x32xf32> to vector<16x32xf32>
    %c0_32 = arith.constant 0 : index
    %c0_33 = arith.constant 0 : index
    %102 = vector.load %arg5[%c0_32, %c0_33] : memref<32x32xf32, #tpu.memory_space<vmem>>, vector<32x32xf32>
    %cst_34 = arith.constant dense<0.000000e+00> : vector<16x32xf32>
    %103 = tpu.matmul %101, %102, %cst_34 {dimension_numbers = #tpu.dot_dimension_numbers<[1], [0], [0], [1], [0, 0, 1, 1], [], []>} : vector<16x32xf32>, vector<32x32xf32>, vector<16x32xf32> -> vector<16x32xf32>
    %c0_35 = arith.constant 0 : index
    %c0_36 = arith.constant 0 : index
    %104 = vector.load %arg6[%c0_35, %c0_36] : memref<1x32xf32, #tpu.memory_space<vmem>>, vector<1x32xf32>
    %105 = vector.broadcast %104 : vector<1x32xf32> to vector<16x32xf32>
    %106 = arith.addf %103, %105 : vector<16x32xf32>
    %107 = arith.addf %0, %106 : vector<16x32xf32>
    %cst_37 = arith.constant dense<0.000000e+00> : vector<16xf32>
    %108 = vector.multi_reduction <add>, %107, %cst_37 [1] : vector<16x32xf32> to vector<16xf32>
    %109 = vector.shape_cast %108 : vector<16xf32> to vector<16x1xf32>
    %cst_38 = arith.constant 3.200000e+01 : f32
    %110 = vector.broadcast %cst_38 : f32 to vector<16x1xf32>
    %111 = arith.divf %109, %110 : vector<16x1xf32>
    %112 = vector.broadcast %111 : vector<16x1xf32> to vector<16x32xf32>
    %113 = arith.subf %107, %112 : vector<16x32xf32>
    %114 = arith.mulf %113, %113 : vector<16x32xf32>
    %cst_39 = arith.constant dense<0.000000e+00> : vector<16xf32>
    %115 = vector.multi_reduction <add>, %114, %cst_39 [1] : vector<16x32xf32> to vector<16xf32>
    %116 = vector.shape_cast %115 : vector<16xf32> to vector<16x1xf32>
    %cst_40 = arith.constant 3.200000e+01 : f32
    %117 = vector.broadcast %cst_40 : f32 to vector<16x1xf32>
    %118 = arith.divf %116, %117 : vector<16x1xf32>
    %119 = vector.broadcast %111 : vector<16x1xf32> to vector<16x32xf32>
    %120 = arith.subf %107, %119 : vector<16x32xf32>
    %cst_41 = arith.constant 9.99999974E-6 : f32
    %121 = vector.broadcast %cst_41 : f32 to vector<16x1xf32>
    %122 = arith.addf %118, %121 : vector<16x1xf32>
    %123 = math.rsqrt %122 : vector<16x1xf32>
    %124 = vector.broadcast %123 : vector<16x1xf32> to vector<16x32xf32>
    %125 = arith.mulf %120, %124 : vector<16x32xf32>
    %c0_42 = arith.constant 0 : index
    %c0_43 = arith.constant 0 : index
    %126 = vector.load %arg7[%c0_42, %c0_43] : memref<32x128xf32, #tpu.memory_space<vmem>>, vector<32x128xf32>
    %cst_44 = arith.constant dense<0.000000e+00> : vector<16x128xf32>
    %127 = tpu.matmul %125, %126, %cst_44 {dimension_numbers = #tpu.dot_dimension_numbers<[1], [0], [0], [1], [0, 0, 1, 1], [], []>} : vector<16x32xf32>, vector<32x128xf32>, vector<16x128xf32> -> vector<16x128xf32>
    %c0_45 = arith.constant 0 : index
    %c0_46 = arith.constant 0 : index
    %128 = vector.load %arg8[%c0_45, %c0_46] : memref<1x128xf32, #tpu.memory_space<vmem>>, vector<1x128xf32>
    %129 = vector.broadcast %128 : vector<1x128xf32> to vector<16x128xf32>
    %130 = arith.addf %127, %129 : vector<16x128xf32>
    %cst_47 = arith.constant 5.000000e-01 : f32
    %131 = vector.broadcast %cst_47 : f32 to vector<16x128xf32>
    %132 = arith.mulf %131, %130 : vector<16x128xf32>
    %cst_48 = arith.constant 0.707106769 : f32
    %133 = vector.broadcast %cst_48 : f32 to vector<16x128xf32>
    %134 = arith.mulf %130, %133 : vector<16x128xf32>
    %135 = math.erf %134 : vector<16x128xf32>
    %cst_49 = arith.constant 1.000000e+00 : f32
    %136 = vector.broadcast %cst_49 : f32 to vector<16x128xf32>
    %137 = arith.addf %136, %135 : vector<16x128xf32>
    %138 = arith.mulf %132, %137 : vector<16x128xf32>
    %c0_50 = arith.constant 0 : index
    %c0_51 = arith.constant 0 : index
    %139 = vector.load %arg9[%c0_50, %c0_51] : memref<128x32xf32, #tpu.memory_space<vmem>>, vector<128x32xf32>
    %cst_52 = arith.constant dense<0.000000e+00> : vector<16x32xf32>
    %140 = tpu.matmul %138, %139, %cst_52 {dimension_numbers = #tpu.dot_dimension_numbers<[1], [0], [0], [1], [0, 0, 1, 1], [], []>} : vector<16x128xf32>, vector<128x32xf32>, vector<16x32xf32> -> vector<16x32xf32>
    %c0_53 = arith.constant 0 : index
    %c0_54 = arith.constant 0 : index
    %141 = vector.load %arg10[%c0_53, %c0_54] : memref<1x32xf32, #tpu.memory_space<vmem>>, vector<1x32xf32>
    %142 = vector.broadcast %141 : vector<1x32xf32> to vector<16x32xf32>
    %143 = arith.addf %140, %142 : vector<16x32xf32>
    %144 = arith.addf %107, %143 : vector<16x32xf32>
    %c0_55 = arith.constant 0 : index
    %c0_56 = arith.constant 0 : index
    %145 = vector.load %arg11[%c0_55, %c0_56] : memref<16x32xf32, #tpu.memory_space<vmem>>, vector<16x32xf32>
    tpu.vector_store %arg11[%c0_55, %c0_56], %144 {strides = array<i32>} : memref<16x32xf32, #tpu.memory_space<vmem>>, vector<16x32xf32>,
    return
  }
}

</mosaic_0001>

<llo_original>
// kernel: tpu_custom_call.1
$region0: #{tpu_custom_call.1}
  #allocation0 [shape = 'u32[]', space=smem, size = 0x4, offset = 0x4, fixed_abs, tag = 'smem constant byte address 0x4 - core index']
  #allocation1 [shape = 'u32[144,128]{1,0:T(1,128)}', space=vmem, size = 0x12000, scoped, tag = 'internal scratch']
  %s0 = inlined_call_operand.vmem [shape: f32[16,32], index: 0, kind: input, shape index: {}]
  %s1 = inlined_call_operand.vmem [shape: f32[2,8,8], index: 1, kind: input, shape index: {}]
  %s2 = inlined_call_operand.vmem [shape: f32[2,8,8], index: 2, kind: input, shape index: {}]
  %s3 = inlined_call_operand.vmem [shape: f32[32,96], index: 3, kind: input, shape index: {}]
  %s4 = inlined_call_operand.vmem [shape: f32[1,96], index: 4, kind: input, shape index: {}]
  %s5 = inlined_call_operand.vmem [shape: f32[32,32], index: 5, kind: input, shape index: {}]
  %s6 = inlined_call_operand.vmem [shape: f32[1,32], index: 6, kind: input, shape index: {}]
  %s7 = inlined_call_operand.vmem [shape: f32[32,128], index: 7, kind: input, shape index: {}]
  %s8 = inlined_call_operand.vmem [shape: f32[1,128], index: 8, kind: input, shape index: {}]
  %s9 = inlined_call_operand.vmem [shape: f32[128,32], index: 9, kind: input, shape index: {}]
  %s10 = inlined_call_operand.vmem [shape: f32[1,32], index: 10, kind: input, shape index: {}]
  %s11 = inlined_call_operand.hbm [shape: f32[16,32], index: 11, kind: output, shape index: {}]
  %s12 = sld [smem:[#allocation0]]
  $region54: #{tpu_custom_call.1} parent=0
    _
  %s14 = ssub.s32 1, %s12
  %s15 = scalar_select 0, %s14, %s12
  $region1: #{tpu_custom_call.1} parent=0
    #allocation2 [shape = 'u8[8192]{0}', space=vmem, size = 0x2000, scoped, tag = 'output window, operand 0, single buffered']
    #allocation3 [shape = 's32[1]{0}', space=sflag, size = 0x4, scoped, tag = 'scoped memory for tpu_custom_call.1']
    %16 = vsyncpa [#allocation3], 0
    // Predicated region
    $region2: #{tpu_custom_call.1} parent=1 // pred_check
      _
    $region3: #{tpu_custom_call.1} parent=1 // pred_check_branch
      %18 = sbr.rel (0) target = $region5
    $region4: #{tpu_custom_call.1} parent=1 // pred_region
      _
    $region5: #{tpu_custom_call.1} parent=1 // pred_fallthru
      _
    // Predicated region
    $region6: #{tpu_custom_call.1} parent=1 // pred_check
      _
    $region7: #{tpu_custom_call.1} parent=1 // pred_check_branch
      %20 = sbr.rel (0) target = $region9
    $region8: #{tpu_custom_call.1} parent=1 // pred_region
      _
    $region9: #{tpu_custom_call.1} parent=1 // pred_fallthru
      _
    // Predicated region
    $region10: #{tpu_custom_call.1} parent=1 // pred_check
      _
    $region11: #{tpu_custom_call.1} parent=1 // pred_check_branch
      %22 = sbr.rel (0) target = $region13
    $region12: #{tpu_custom_call.1} parent=1 // pred_region
      _
    $region13: #{tpu_custom_call.1} parent=1 // pred_fallthru
      _
    // Predicated region
    $region14: #{tpu_custom_call.1} parent=1 // pred_check
      _
    $region15: #{tpu_custom_call.1} parent=1 // pred_check_branch
      %24 = sbr.rel (0) target = $region17
    $region16: #{tpu_custom_call.1} parent=1 // pred_region
      _
    $region17: #{tpu_custom_call.1} parent=1 // pred_fallthru
      _
    // Predicated region
    $region18: #{tpu_custom_call.1} parent=1 // pred_check
      _
    $region19: #{tpu_custom_call.1} parent=1 // pred_check_branch
      %26 = sbr.rel (0) target = $region21
    $region20: #{tpu_custom_call.1} parent=1 // pred_region
      _
    $region21: #{tpu_custom_call.1} parent=1 // pred_fallthru
      _
    // Predicated region
    $region22: #{tpu_custom_call.1} parent=1 // pred_check
      _
    $region23: #{tpu_custom_call.1} parent=1 // pred_check_branch
      %28 = sbr.rel (0) target = $region25
    $region24: #{tpu_custom_call.1} parent=1 // pred_region
      _
    $region25: #{tpu_custom_call.1} parent=1 // pred_fallthru
      _
    // Predicated region
    $region26: #{tpu_custom_call.1} parent=1 // pred_check
      _
    $region27: #{tpu_custom_call.1} parent=1 // pred_check_branch
      %30 = sbr.rel (0) target = $region29
    $region28: #{tpu_custom_call.1} parent=1 // pred_region
      _
    $region29: #{tpu_custom_call.1} parent=1 // pred_fallthru
      _
    // Predicated region
    $region30: #{tpu_custom_call.1} parent=1 // pred_check
      _
    $region31: #{tpu_custom_call.1} parent=1 // pred_check_branch
      %32 = sbr.rel (0) target = $region33
    $region32: #{tpu_custom_call.1} parent=1 // pred_region
      _
    $region33: #{tpu_custom_call.1} parent=1 // pred_fallthru
      _
    // Predicated region
    $region34: #{tpu_custom_call.1} parent=1 // pred_check
      _
    $region35: #{tpu_custom_call.1} parent=1 // pred_check_branch
      %34 = sbr.rel (0) target = $region37
    $region36: #{tpu_custom_call.1} parent=1 // pred_region
      _
    $region37: #{tpu_custom_call.1} parent=1 // pred_fallthru
      _
    // Predicated region
    $region38: #{tpu_custom_call.1} parent=1 // pred_check
      _
    $region39: #{tpu_custom_call.1} parent=1 // pred_check_branch
      %36 = sbr.rel (0) target = $region41
    $region40: #{tpu_custom_call.1} parent=1 // pred_region
      _
    $region41: #{tpu_custom_call.1} parent=1 // pred_fallthru
      _
    // Predicated region
    $region42: #{tpu_custom_call.1} parent=1 // pred_check
      _
    $region43: #{tpu_custom_call.1} parent=1 // pred_check_branch
      %38 = sbr.rel (0) target = $region45
    $region44: #{tpu_custom_call.1} parent=1 // pred_region
      _
    $region45: #{tpu_custom_call.1} parent=1 // pred_fallthru
      _
    %v39 = vld [vmem:[%s0] sm:$0xff]
    %v40 = vld [vmem:[%s0 + $0x8] sm:$0xff]
    %v41 = vld [vmem:[%s1] sm:$0xff]
    %v42 = vld [vmem:[%s1 + $0x8] sm:$0xff]
    %v43 = vld [vmem:[%s2] sm:$0xff]
    %v44 = vld [vmem:[%s2 + $0x8] sm:$0xff]
    %vm45 = vcmask 261120
    %v46 = vsel %vm45, %v39, 0.0
    %47 = vadd.xlane.f32.xlu0 %v46
    %v48 = vpop.xlane.xlu0 %47
    %v49 = vsel %vm45, %v40, 0.0
    %50 = vadd.xlane.f32.xlu0 %v49
    %v51 = vpop.xlane.xlu0 %50
    %v52 = vrcp.pop 32.0
    %v53 = vmul.f32 %v48, %v52
    %v54 = vmul.f32 %v51, %v52
    %v55 = vsub.f32 %v39, %v53
    %v56 = vsub.f32 %v40, %v54
    %v57 = vmul.f32 %v55, %v55
    %v58 = vmul.f32 %v56, %v56
    %v59 = vsel %vm45, %v57, 0.0
    %60 = vadd.xlane.f32.xlu0 %v59
    %v61 = vpop.xlane.xlu0 %60
    %v62 = vsel %vm45, %v58, 0.0
    %63 = vadd.xlane.f32.xlu0 %v62
    %v64 = vpop.xlane.xlu0 %63
    %v65 = vmul.f32 %v61, %v52
    %v66 = vmul.f32 %v64, %v52
    %v67 = vadd.f32 %v65, 1e-05
    %v68 = vadd.f32 %v66, 1e-05
    %v69 = vrsqrt.pop %v67
    %v70 = vrsqrt.pop %v68
    %v71 = vmul.f32 %v55, %v69
    %v72 = vmul.f32 %v56, %v70
    %v73 = vld [vmem:[%s3] sm:$0xff]
    %v74 = vld [vmem:[%s3 + $0x8] sm:$0xff]
    %v75 = vld [vmem:[%s3 + $0x10] sm:$0xff]
    %v76 = vld [vmem:[%s3 + $0x18] sm:$0xff]
    %v77 = vld [vmem:[%s4] sm:$0x1]
    %v79 = vlaneseq
    %v80 = vshrl.u32 %v79, 7
    %v81 = vsub.s32 0, %v80
    %v82 = vrot.slane %v77, %v81
    %v85 = vsel %vm45, %v71, 0
    %v88 = vsel %vm45, %v72, 0
    %90 = vmatprep.subr.mxu0 0.0
    %91 = vmatpush1.msra.mxu0 %v73
    %92 = vmatprep.subr.mxu0 0.0
    %93 = vmatpush1.msra.mxu0 %v74
    %94 = vmatprep.subr.mxu0 0.0
    %95 = vmatpush1.msra.mxu0 %v75
    %96 = vmatprep.subr.mxu0 0.0
    %97 = vmatpush1.msra.mxu0 %v76
    %98 = vmatprep.subr.mxu0 0.0
    %99 = vmatpush1.msra.mxu0 0.0
    %100 = vmatprep.subr.mxu0 0.0
    %101 = vmatpush1.msra.mxu0 0.0
    %102 = vmatprep.subr.mxu0 0.0
    %103 = vmatpush1.msra.mxu0 0.0
    %104 = vmatprep.subr.mxu0 0.0
    %105 = vmatpush1.msra.mxu0 0.0
    %106 = vmatprep.subr.mxu0 0.0
    %107 = vmatpush1.msra.mxu0 0.0
    %108 = vmatprep.subr.mxu0 0.0
    %109 = vmatpush1.msra.mxu0 0.0
    %110 = vmatprep.subr.mxu0 0.0
    %111 = vmatpush1.msra.mxu0 0.0
    %112 = vmatprep.subr.mxu0 0.0
    %113 = vmatpush1.msra.mxu0 0.0
    %114 = vmatprep.subr.mxu0 0.0
    %115 = vmatpush1.msra.mxu0 0.0
    %116 = vmatprep.subr.mxu0 0.0
    %117 = vmatpush1.msra.mxu0 0.0
    %118 = vmatprep.subr.mxu0 0.0
    %119 = vmatpush1.msra.mxu0 0.0
    %120 = vmatprep.subr.mxu0 0.0
    %121 = vmatpush1.msra.mxu0 0.0
    %122 = vmatprep.subr.mxu0 0.0
    %123 = vmatpush1.msra.mxu0 0.0
    %124 = vmatprep.subr.mxu0 0.0
    %125 = vmatpush1.msra.mxu0 0.0
    %126 = vmatprep.subr.mxu0 0.0
    %127 = vmatpush1.msra.mxu0 0.0
    %128 = vmatprep.subr.mxu0 0.0
    %129 = vmatpush1.msra.mxu0 0.0
    %130 = vmatprep.subr.mxu0 0.0
    %131 = vmatpush1.msra.mxu0 0.0
    %132 = vmatprep.subr.mxu0 0.0
    %133 = vmatpush1.msra.mxu0 0.0
    %134 = vmatprep.subr.mxu0 0.0
    %135 = vmatpush1.msra.mxu0 0.0
    %136 = vmatprep.subr.mxu0 0.0
    %137 = vmatpush1.msra.mxu0 0.0
    %138 = vmatprep.subr.mxu0 0.0
    %139 = vmatpush1.msra.mxu0 0.0
    %140 = vmatprep.subr.mxu0 0.0
    %141 = vmatpush1.msra.mxu0 0.0
    %142 = vmatprep.subr.mxu0 0.0
    %143 = vmatpush1.msra.mxu0 0.0
    %144 = vmatprep.subr.mxu0 0.0
    %145 = vmatpush1.msra.mxu0 0.0
    %146 = vmatprep.subr.mxu0 0.0
    %147 = vmatpush1.msra.mxu0 0.0
    %148 = vmatprep.subr.mxu0 0.0
    %149 = vmatpush1.msra.mxu0 0.0
    %150 = vmatprep.subr.mxu0 0.0
    %151 = vmatpush1.msra.mxu0 0.0
    %152 = vmatprep.subr.mxu0 0.0
    %153 = vmatpush1.msra.mxu0 0.0
    %154 = vmatprep.mubr.f32.mxu0 0.0
    %155 = vmatmul.mubr.f32.gmra.mrb[0].mxu0 %v85
    %v156 = vpop.f32.mrb[0].mxu0
    %v157 = vadd.f32 %v82, %v156
    %v158 = vpop.f32.mrb[0].mxu0
    %159 = vmatprep.mubr.f32.mxu0 0.0
    %160 = vmatmul.mubr.f32.gmra.mrb[0].mxu0 %v88
    %v161 = vpop.f32.mrb[0].mxu0
    %v162 = vadd.f32 %v82, %v161
    %v163 = vpop.f32.mrb[0].mxu0
    %164 = vdwg.mxu0
    %166 = vrot.lane.b32.xlu0 %v157, 96
    %v167 = vpop.permute.xlu0 %166
    %vm168 = vcmask 64512
    %v169 = vsel %vm168, %v157, 0
    %v171 = vsel %vm168, %v167, 0
    %173 = vmatprep.subr.mxu0 0.0
    %174 = vmatpush1.xpose.msra.mxu0 %v171
    %175 = vmatprep.subr.mxu0 0.0
    %176 = vmatpush1.xpose.msra.mxu0 0.0
    %177 = vmatprep.subr.mxu0 0.0
    %178 = vmatpush1.xpose.msra.mxu0 0.0
    %179 = vmatprep.subr.mxu0 0.0
    %180 = vmatpush1.xpose.msra.mxu0 0.0
    %181 = vmatprep.subr.mxu0 0.0
    %182 = vmatpush1.xpose.msra.mxu0 0.0
    %183 = vmatprep.subr.mxu0 0.0
    %184 = vmatpush1.xpose.msra.mxu0 0.0
    %185 = vmatprep.subr.mxu0 0.0
    %186 = vmatpush1.xpose.msra.mxu0 0.0
    %187 = vmatprep.subr.mxu0 0.0
    %188 = vmatpush1.xpose.msra.mxu0 0.0
    %189 = vmatprep.subr.mxu0 0.0
    %190 = vmatpush1.xpose.msra.mxu0 0.0
    %191 = vmatprep.subr.mxu0 0.0
    %192 = vmatpush1.xpose.msra.mxu0 0.0
    %193 = vmatprep.subr.mxu0 0.0
    %194 = vmatpush1.xpose.msra.mxu0 0.0
    %195 = vmatprep.subr.mxu0 0.0
    %196 = vmatpush1.xpose.msra.mxu0 0.0
    %197 = vmatprep.subr.mxu0 0.0
    %198 = vmatpush1.xpose.msra.mxu0 0.0
    %199 = vmatprep.subr.mxu0 0.0
    %200 = vmatpush1.xpose.msra.mxu0 0.0
    %201 = vmatprep.subr.mxu0 0.0
    %202 = vmatpush1.xpose.msra.mxu0 0.0
    %203 = vmatprep.subr.mxu0 0.0
    %204 = vmatpush1.xpose.msra.mxu0 0.0
    %205 = vmatprep.subr.mxu0 0.0
    %206 = vmatpush1.xpose.msra.mxu0 0.0
    %207 = vmatprep.subr.mxu0 0.0
    %208 = vmatpush1.xpose.msra.mxu0 0.0
    %209 = vmatprep.subr.mxu0 0.0
    %210 = vmatpush1.xpose.msra.mxu0 0.0
    %211 = vmatprep.subr.mxu0 0.0
    %212 = vmatpush1.xpose.msra.mxu0 0.0
    %213 = vmatprep.subr.mxu0 0.0
    %214 = vmatpush1.xpose.msra.mxu0 0.0
    %215 = vmatprep.subr.mxu0 0.0
    %216 = vmatpush1.xpose.msra.mxu0 0.0
    %217 = vmatprep.subr.mxu0 0.0
    %218 = vmatpush1.xpose.msra.mxu0 0.0
    %219 = vmatprep.subr.mxu0 0.0
    %220 = vmatpush1.xpose.msra.mxu0 0.0
    %221 = vmatprep.subr.mxu0 0.0
    %222 = vmatpush1.xpose.msra.mxu0 0.0
    %223 = vmatprep.subr.mxu0 0.0
    %224 = vmatpush1.xpose.msra.mxu0 0.0
    %225 = vmatprep.subr.mxu0 0.0
    %226 = vmatpush1.xpose.msra.mxu0 0.0
    %227 = vmatprep.subr.mxu0 0.0
    %228 = vmatpush1.xpose.msra.mxu0 0.0
    %229 = vmatprep.subr.mxu0 0.0
    %230 = vmatpush1.xpose.msra.mxu0 0.0
    %231 = vmatprep.subr.mxu0 0.0
    %232 = vmatpush1.xpose.msra.mxu0 0.0
    %233 = vmatprep.subr.mxu0 0.0
    %234 = vmatpush1.xpose.msra.mxu0 0.0
    %235 = vmatprep.subr.mxu0 0.0
    %236 = vmatpush1.xpose.msra.mxu0 0.0
    %237 = vmatprep.mubr.f32.mxu0 0.0
    %238 = vmatmul.mubr.f32.gmra.mrb[0].mxu0 %v169
    %v239 = vpop.f32.mrb[0].mxu0
    %v240 = vadd.f32 %v41, %v239
    %v241 = vpop.f32.mrb[0].mxu0
    %242 = vdwg.mxu0
    %244 = vrot.lane.b32.xlu0 %v162, 96
    %v245 = vpop.permute.xlu0 %244
    %v246 = vsel %vm168, %v162, 0
    %v248 = vsel %vm168, %v245, 0
    %250 = vmatprep.subr.mxu0 0.0
    %251 = vmatpush1.xpose.msra.mxu0 %v248
    %252 = vmatprep.subr.mxu0 0.0
    %253 = vmatpush1.xpose.msra.mxu0 0.0
    %254 = vmatprep.subr.mxu0 0.0
    %255 = vmatpush1.xpose.msra.mxu0 0.0
    %256 = vmatprep.subr.mxu0 0.0
    %257 = vmatpush1.xpose.msra.mxu0 0.0
    %258 = vmatprep.subr.mxu0 0.0
    %259 = vmatpush1.xpose.msra.mxu0 0.0
    %260 = vmatprep.subr.mxu0 0.0
    %261 = vmatpush1.xpose.msra.mxu0 0.0
    %262 = vmatprep.subr.mxu0 0.0
    %263 = vmatpush1.xpose.msra.mxu0 0.0
    %264 = vmatprep.subr.mxu0 0.0
    %265 = vmatpush1.xpose.msra.mxu0 0.0
    %266 = vmatprep.subr.mxu0 0.0
    %267 = vmatpush1.xpose.msra.mxu0 0.0
    %268 = vmatprep.subr.mxu0 0.0
    %269 = vmatpush1.xpose.msra.mxu0 0.0
    %270 = vmatprep.subr.mxu0 0.0
    %271 = vmatpush1.xpose.msra.mxu0 0.0
    %272 = vmatprep.subr.mxu0 0.0
    %273 = vmatpush1.xpose.msra.mxu0 0.0
    %274 = vmatprep.subr.mxu0 0.0
    %275 = vmatpush1.xpose.msra.mxu0 0.0
    %276 = vmatprep.subr.mxu0 0.0
    %277 = vmatpush1.xpose.msra.mxu0 0.0
    %278 = vmatprep.subr.mxu0 0.0
    %279 = vmatpush1.xpose.msra.mxu0 0.0
    %280 = vmatprep.subr.mxu0 0.0
    %281 = vmatpush1.xpose.msra.mxu0 0.0
    %282 = vmatprep.subr.mxu0 0.0
    %283 = vmatpush1.xpose.msra.mxu0 0.0
    %284 = vmatprep.subr.mxu0 0.0
    %285 = vmatpush1.xpose.msra.mxu0 0.0
    %286 = vmatprep.subr.mxu0 0.0
    %287 = vmatpush1.xpose.msra.mxu0 0.0
    %288 = vmatprep.subr.mxu0 0.0
    %289 = vmatpush1.xpose.msra.mxu0 0.0
    %290 = vmatprep.subr.mxu0 0.0
    %291 = vmatpush1.xpose.msra.mxu0 0.0
    %292 = vmatprep.subr.mxu0 0.0
    %293 = vmatpush1.xpose.msra.mxu0 0.0
    %294 = vmatprep.subr.mxu0 0.0
    %295 = vmatpush1.xpose.msra.mxu0 0.0
    %296 = vmatprep.subr.mxu0 0.0
    %297 = vmatpush1.xpose.msra.mxu0 0.0
    %298 = vmatprep.subr.mxu0 0.0
    %299 = vmatpush1.xpose.msra.mxu0 0.0
    %300 = vmatprep.subr.mxu0 0.0
    %301 = vmatpush1.xpose.msra.mxu0 0.0
    %302 = vmatprep.subr.mxu0 0.0
    %303 = vmatpush1.xpose.msra.mxu0 0.0
    %304 = vmatprep.subr.mxu0 0.0
    %305 = vmatpush1.xpose.msra.mxu0 0.0
    %306 = vmatprep.subr.mxu0 0.0
    %307 = vmatpush1.xpose.msra.mxu0 0.0
    %308 = vmatprep.subr.mxu0 0.0
    %309 = vmatpush1.xpose.msra.mxu0 0.0
    %310 = vmatprep.subr.mxu0 0.0
    %311 = vmatpush1.xpose.msra.mxu0 0.0
    %312 = vmatprep.subr.mxu0 0.0
    %313 = vmatpush1.xpose.msra.mxu0 0.0
    %314 = vmatprep.mubr.f32.mxu0 0.0
    %315 = vmatmul.mubr.f32.gmra.mrb[0].mxu0 %v246
    %v316 = vpop.f32.mrb[0].mxu0
    %v317 = vadd.f32 %v42, %v316
    %v318 = vpop.f32.mrb[0].mxu0
    %319 = vdwg.mxu0
    %v320 = vsel %vm168, %v240, -inf
    %321 = vmax.xlane.f32.xlu0 %v320
    %v322 = vpop.xlane.xlu0 %321
    %v323 = vsel %vm168, %v317, -inf
    %324 = vmax.xlane.f32.xlu0 %v323
    %v325 = vpop.xlane.xlu0 %324
    %v326 = vsub.f32 %v240, %v322
    %v327 = vsub.f32 %v317, %v325
    %v328 = vmul.f32 %v326, 1.442695
    %v329 = vpow.pop %v328
    %v330 = vmul.f32 %v327, 1.442695
    %v331 = vpow.pop %v330
    %v332 = vsel %vm168, %v329, 0.0
    %333 = vadd.xlane.f32.xlu0 %v332
    %v334 = vpop.xlane.xlu0 %333
    %v335 = vsel %vm168, %v331, 0.0
    %336 = vadd.xlane.f32.xlu0 %v335
    %v337 = vpop.xlane.xlu0 %336
    %v338 = vrcp.pop %v334
    %v339 = vrcp.pop %v337
    %v340 = vmul.f32 %v329, %v338
    %v341 = vmul.f32 %v331, %v339
    %v342 = vmul.f32 %v340, %v43
    %v343 = vmul.f32 %v341, %v44
    %344 = vrot.lane.b32.xlu0 %v157, 64
    %v345 = vpop.permute.xlu0 %344
    %v348 = vsel %vm168, %v342, 0
    %350 = vmatprep.subr.mxu0 0.0
    %351 = vmatpush1.msra.mxu0 %v345
    %352 = vmatprep.subr.mxu0 0.0
    %353 = vmatpush1.msra.mxu0 0.0
    %354 = vmatprep.subr.mxu0 0.0
    %355 = vmatpush1.msra.mxu0 0.0
    %356 = vmatprep.subr.mxu0 0.0
    %357 = vmatpush1.msra.mxu0 0.0
    %358 = vmatprep.subr.mxu0 0.0
    %359 = vmatpush1.msra.mxu0 0.0
    %360 = vmatprep.subr.mxu0 0.0
    %361 = vmatpush1.msra.mxu0 0.0
    %362 = vmatprep.subr.mxu0 0.0
    %363 = vmatpush1.msra.mxu0 0.0
    %364 = vmatprep.subr.mxu0 0.0
    %365 = vmatpush1.msra.mxu0 0.0
    %366 = vmatprep.subr.mxu0 0.0
    %367 = vmatpush1.msra.mxu0 0.0
    %368 = vmatprep.subr.mxu0 0.0
    %369 = vmatpush1.msra.mxu0 0.0
    %370 = vmatprep.subr.mxu0 0.0
    %371 = vmatpush1.msra.mxu0 0.0
    %372 = vmatprep.subr.mxu0 0.0
    %373 = vmatpush1.msra.mxu0 0.0
    %374 = vmatprep.subr.mxu0 0.0
    %375 = vmatpush1.msra.mxu0 0.0
    %376 = vmatprep.subr.mxu0 0.0
    %377 = vmatpush1.msra.mxu0 0.0
    %378 = vmatprep.subr.mxu0 0.0
    %379 = vmatpush1.msra.mxu0 0.0
    %380 = vmatprep.subr.mxu0 0.0
    %381 = vmatpush1.msra.mxu0 0.0
    %382 = vmatprep.subr.mxu0 0.0
    %383 = vmatpush1.msra.mxu0 0.0
    %384 = vmatprep.subr.mxu0 0.0
    %385 = vmatpush1.msra.mxu0 0.0
    %386 = vmatprep.subr.mxu0 0.0
    %387 = vmatpush1.msra.mxu0 0.0
    %388 = vmatprep.subr.mxu0 0.0
    %389 = vmatpush1.msra.mxu0 0.0
    %390 = vmatprep.subr.mxu0 0.0
    %391 = vmatpush1.msra.mxu0 0.0
    %392 = vmatprep.subr.mxu0 0.0
    %393 = vmatpush1.msra.mxu0 0.0
    %394 = vmatprep.subr.mxu0 0.0
    %395 = vmatpush1.msra.mxu0 0.0
    %396 = vmatprep.subr.mxu0 0.0
    %397 = vmatpush1.msra.mxu0 0.0
    %398 = vmatprep.subr.mxu0 0.0
    %399 = vmatpush1.msra.mxu0 0.0
    %400 = vmatprep.subr.mxu0 0.0
    %401 = vmatpush1.msra.mxu0 0.0
    %402 = vmatprep.subr.mxu0 0.0
    %403 = vmatpush1.msra.mxu0 0.0
    %404 = vmatprep.subr.mxu0 0.0
    %405 = vmatpush1.msra.mxu0 0.0
    %406 = vmatprep.subr.mxu0 0.0
    %407 = vmatpush1.msra.mxu0 0.0
    %408 = vmatprep.subr.mxu0 0.0
    %409 = vmatpush1.msra.mxu0 0.0
    %410 = vmatprep.subr.mxu0 0.0
    %411 = vmatpush1.msra.mxu0 0.0
    %412 = vmatprep.subr.mxu0 0.0
    %413 = vmatpush1.msra.mxu0 0.0
    %414 = vmatprep.mubr.f32.mxu0 0.0
    %415 = vmatmul.mubr.f32.gmra.mrb[0].mxu0 %v348
    %v416 = vpop.f32.mrb[0].mxu0
    %v417 = vadd.f32 0.0, %v416
    %v418 = vpop.f32.mrb[0].mxu0
    %419 = vdwg.mxu0
    %420 = vrot.lane.b32.xlu0 %v162, 64
    %v421 = vpop.permute.xlu0 %420
    %v424 = vsel %vm168, %v343, 0
    %426 = vmatprep.subr.mxu0 0.0
    %427 = vmatpush1.msra.mxu0 %v421
    %428 = vmatprep.subr.mxu0 0.0
    %429 = vmatpush1.msra.mxu0 0.0
    %430 = vmatprep.subr.mxu0 0.0
    %431 = vmatpush1.msra.mxu0 0.0
    %432 = vmatprep.subr.mxu0 0.0
    %433 = vmatpush1.msra.mxu0 0.0
    %434 = vmatprep.subr.mxu0 0.0
    %435 = vmatpush1.msra.mxu0 0.0
    %436 = vmatprep.subr.mxu0 0.0
    %437 = vmatpush1.msra.mxu0 0.0
    %438 = vmatprep.subr.mxu0 0.0
    %439 = vmatpush1.msra.mxu0 0.0
    %440 = vmatprep.subr.mxu0 0.0
    %441 = vmatpush1.msra.mxu0 0.0
    %442 = vmatprep.subr.mxu0 0.0
    %443 = vmatpush1.msra.mxu0 0.0
    %444 = vmatprep.subr.mxu0 0.0
    %445 = vmatpush1.msra.mxu0 0.0
    %446 = vmatprep.subr.mxu0 0.0
    %447 = vmatpush1.msra.mxu0 0.0
    %448 = vmatprep.subr.mxu0 0.0
    %449 = vmatpush1.msra.mxu0 0.0
    %450 = vmatprep.subr.mxu0 0.0
    %451 = vmatpush1.msra.mxu0 0.0
    %452 = vmatprep.subr.mxu0 0.0
    %453 = vmatpush1.msra.mxu0 0.0
    %454 = vmatprep.subr.mxu0 0.0
    %455 = vmatpush1.msra.mxu0 0.0
    %456 = vmatprep.subr.mxu0 0.0
    %457 = vmatpush1.msra.mxu0 0.0
    %458 = vmatprep.subr.mxu0 0.0
    %459 = vmatpush1.msra.mxu0 0.0
    %460 = vmatprep.subr.mxu0 0.0
    %461 = vmatpush1.msra.mxu0 0.0
    %462 = vmatprep.subr.mxu0 0.0
    %463 = vmatpush1.msra.mxu0 0.0
    %464 = vmatprep.subr.mxu0 0.0
    %465 = vmatpush1.msra.mxu0 0.0
    %466 = vmatprep.subr.mxu0 0.0
    %467 = vmatpush1.msra.mxu0 0.0
    %468 = vmatprep.subr.mxu0 0.0
    %469 = vmatpush1.msra.mxu0 0.0
    %470 = vmatprep.subr.mxu0 0.0
    %471 = vmatpush1.msra.mxu0 0.0
    %472 = vmatprep.subr.mxu0 0.0
    %473 = vmatpush1.msra.mxu0 0.0
    %474 = vmatprep.subr.mxu0 0.0
    %475 = vmatpush1.msra.mxu0 0.0
    %476 = vmatprep.subr.mxu0 0.0
    %477 = vmatpush1.msra.mxu0 0.0
    %478 = vmatprep.subr.mxu0 0.0
    %479 = vmatpush1.msra.mxu0 0.0
    %480 = vmatprep.subr.mxu0 0.0
    %481 = vmatpush1.msra.mxu0 0.0
    %482 = vmatprep.subr.mxu0 0.0
    %483 = vmatpush1.msra.mxu0 0.0
    %484 = vmatprep.subr.mxu0 0.0
    %485 = vmatpush1.msra.mxu0 0.0
    %486 = vmatprep.subr.mxu0 0.0
    %487 = vmatpush1.msra.mxu0 0.0
    %488 = vmatprep.subr.mxu0 0.0
    %489 = vmatpush1.msra.mxu0 0.0
    %490 = vmatprep.mubr.f32.mxu0 0.0
    %491 = vmatmul.mubr.f32.gmra.mrb[0].mxu0 %v424
    %v492 = vpop.f32.mrb[0].mxu0
    %v493 = vadd.f32 0.0, %v492
    %v494 = vpop.f32.mrb[0].mxu0
    %495 = vdwg.mxu0
    %496 = vrot.lane.b32.xlu0 %v157, 120
    %v497 = vpop.permute.xlu0 %496
    %498 = vrot.lane.b32.xlu0 %v157, 88
    %v499 = vpop.permute.xlu0 %498
    %v500 = vsel %vm168, %v497, 0
    %v502 = vsel %vm168, %v499, 0
    %504 = vmatprep.subr.mxu0 0.0
    %505 = vmatpush1.xpose.msra.mxu0 %v502
    %506 = vmatprep.subr.mxu0 0.0
    %507 = vmatpush1.xpose.msra.mxu0 0.0
    %508 = vmatprep.subr.mxu0 0.0
    %509 = vmatpush1.xpose.msra.mxu0 0.0
    %510 = vmatprep.subr.mxu0 0.0
    %511 = vmatpush1.xpose.msra.mxu0 0.0
    %512 = vmatprep.subr.mxu0 0.0
    %513 = vmatpush1.xpose.msra.mxu0 0.0
    %514 = vmatprep.subr.mxu0 0.0
    %515 = vmatpush1.xpose.msra.mxu0 0.0
    %516 = vmatprep.subr.mxu0 0.0
    %517 = vmatpush1.xpose.msra.mxu0 0.0
    %518 = vmatprep.subr.mxu0 0.0
    %519 = vmatpush1.xpose.msra.mxu0 0.0
    %520 = vmatprep.subr.mxu0 0.0
    %521 = vmatpush1.xpose.msra.mxu0 0.0
    %522 = vmatprep.subr.mxu0 0.0
    %523 = vmatpush1.xpose.msra.mxu0 0.0
    %524 = vmatprep.subr.mxu0 0.0
    %525 = vmatpush1.xpose.msra.mxu0 0.0
    %526 = vmatprep.subr.mxu0 0.0
    %527 = vmatpush1.xpose.msra.mxu0 0.0
    %528 = vmatprep.subr.mxu0 0.0
    %529 = vmatpush1.xpose.msra.mxu0 0.0
    %530 = vmatprep.subr.mxu0 0.0
    %531 = vmatpush1.xpose.msra.mxu0 0.0
    %532 = vmatprep.subr.mxu0 0.0
    %533 = vmatpush1.xpose.msra.mxu0 0.0
    %534 = vmatprep.subr.mxu0 0.0
    %535 = vmatpush1.xpose.msra.mxu0 0.0
    %536 = vmatprep.subr.mxu0 0.0
    %537 = vmatpush1.xpose.msra.mxu0 0.0
    %538 = vmatprep.subr.mxu0 0.0
    %539 = vmatpush1.xpose.msra.mxu0 0.0
    %540 = vmatprep.subr.mxu0 0.0
    %541 = vmatpush1.xpose.msra.mxu0 0.0
    %542 = vmatprep.subr.mxu0 0.0
    %543 = vmatpush1.xpose.msra.mxu0 0.0
    %544 = vmatprep.subr.mxu0 0.0
    %545 = vmatpush1.xpose.msra.mxu0 0.0
    %546 = vmatprep.subr.mxu0 0.0
    %547 = vmatpush1.xpose.msra.mxu0 0.0
    %548 = vmatprep.subr.mxu0 0.0
    %549 = vmatpush1.xpose.msra.mxu0 0.0
    %550 = vmatprep.subr.mxu0 0.0
    %551 = vmatpush1.xpose.msra.mxu0 0.0
    %552 = vmatprep.subr.mxu0 0.0
    %553 = vmatpush1.xpose.msra.mxu0 0.0
    %554 = vmatprep.subr.mxu0 0.0
    %555 = vmatpush1.xpose.msra.mxu0 0.0
    %556 = vmatprep.subr.mxu0 0.0
    %557 = vmatpush1.xpose.msra.mxu0 0.0
    %558 = vmatprep.subr.mxu0 0.0
    %559 = vmatpush1.xpose.msra.mxu0 0.0
    %560 = vmatprep.subr.mxu0 0.0
    %561 = vmatpush1.xpose.msra.mxu0 0.0
    %562 = vmatprep.subr.mxu0 0.0
    %563 = vmatpush1.xpose.msra.mxu0 0.0
    %564 = vmatprep.subr.mxu0 0.0
    %565 = vmatpush1.xpose.msra.mxu0 0.0
    %566 = vmatprep.subr.mxu0 0.0
    %567 = vmatpush1.xpose.msra.mxu0 0.0
    %568 = vmatprep.mubr.f32.mxu0 0.0
    %569 = vmatmul.mubr.f32.gmra.mrb[0].mxu0 %v500
    %v570 = vpop.f32.mrb[0].mxu0
    %v571 = vadd.f32 %v41, %v570
    %v572 = vpop.f32.mrb[0].mxu0
    %573 = vdwg.mxu0
    %574 = vrot.lane.b32.xlu0 %v162, 120
    %v575 = vpop.permute.xlu0 %574
    %576 = vrot.lane.b32.xlu0 %v162, 88
    %v577 = vpop.permute.xlu0 %576
    %v578 = vsel %vm168, %v575, 0
    %v580 = vsel %vm168, %v577, 0
    %582 = vmatprep.subr.mxu0 0.0
    %583 = vmatpush1.xpose.msra.mxu0 %v580
    %584 = vmatprep.subr.mxu0 0.0
    %585 = vmatpush1.xpose.msra.mxu0 0.0
    %586 = vmatprep.subr.mxu0 0.0
    %587 = vmatpush1.xpose.msra.mxu0 0.0
    %588 = vmatprep.subr.mxu0 0.0
    %589 = vmatpush1.xpose.msra.mxu0 0.0
    %590 = vmatprep.subr.mxu0 0.0
    %591 = vmatpush1.xpose.msra.mxu0 0.0
    %592 = vmatprep.subr.mxu0 0.0
    %593 = vmatpush1.xpose.msra.mxu0 0.0
    %594 = vmatprep.subr.mxu0 0.0
    %595 = vmatpush1.xpose.msra.mxu0 0.0
    %596 = vmatprep.subr.mxu0 0.0
    %597 = vmatpush1.xpose.msra.mxu0 0.0
    %598 = vmatprep.subr.mxu0 0.0
    %599 = vmatpush1.xpose.msra.mxu0 0.0
    %600 = vmatprep.subr.mxu0 0.0
    %601 = vmatpush1.xpose.msra.mxu0 0.0
    %602 = vmatprep.subr.mxu0 0.0
    %603 = vmatpush1.xpose.msra.mxu0 0.0
    %604 = vmatprep.subr.mxu0 0.0
    %605 = vmatpush1.xpose.msra.mxu0 0.0
    %606 = vmatprep.subr.mxu0 0.0
    %607 = vmatpush1.xpose.msra.mxu0 0.0
    %608 = vmatprep.subr.mxu0 0.0
    %609 = vmatpush1.xpose.msra.mxu0 0.0
    %610 = vmatprep.subr.mxu0 0.0
    %611 = vmatpush1.xpose.msra.mxu0 0.0
    %612 = vmatprep.subr.mxu0 0.0
    %613 = vmatpush1.xpose.msra.mxu0 0.0
    %614 = vmatprep.subr.mxu0 0.0
    %615 = vmatpush1.xpose.msra.mxu0 0.0
    %616 = vmatprep.subr.mxu0 0.0
    %617 = vmatpush1.xpose.msra.mxu0 0.0
    %618 = vmatprep.subr.mxu0 0.0
    %619 = vmatpush1.xpose.msra.mxu0 0.0
    %620 = vmatprep.subr.mxu0 0.0
    %621 = vmatpush1.xpose.msra.mxu0 0.0
    %622 = vmatprep.subr.mxu0 0.0
    %623 = vmatpush1.xpose.msra.mxu0 0.0
    %624 = vmatprep.subr.mxu0 0.0
    %625 = vmatpush1.xpose.msra.mxu0 0.0
    %626 = vmatprep.subr.mxu0 0.0
    %627 = vmatpush1.xpose.msra.mxu0 0.0
    %628 = vmatprep.subr.mxu0 0.0
    %629 = vmatpush1.xpose.msra.mxu0 0.0
    %630 = vmatprep.subr.mxu0 0.0
    %631 = vmatpush1.xpose.msra.mxu0 0.0
    %632 = vmatprep.subr.mxu0 0.0
    %633 = vmatpush1.xpose.msra.mxu0 0.0
    %634 = vmatprep.subr.mxu0 0.0
    %635 = vmatpush1.xpose.msra.mxu0 0.0
    %636 = vmatprep.subr.mxu0 0.0
    %637 = vmatpush1.xpose.msra.mxu0 0.0
    %638 = vmatprep.subr.mxu0 0.0
    %639 = vmatpush1.xpose.msra.mxu0 0.0
    %640 = vmatprep.subr.mxu0 0.0
    %641 = vmatpush1.xpose.msra.mxu0 0.0
    %642 = vmatprep.subr.mxu0 0.0
    %643 = vmatpush1.xpose.msra.mxu0 0.0
    %644 = vmatprep.subr.mxu0 0.0
    %645 = vmatpush1.xpose.msra.mxu0 0.0
    %646 = vmatprep.mubr.f32.mxu0 0.0
    %647 = vmatmul.mubr.f32.gmra.mrb[0].mxu0 %v578
    %v648 = vpop.f32.mrb[0].mxu0
    %v649 = vadd.f32 %v42, %v648
    %v650 = vpop.f32.mrb[0].mxu0
    %651 = vdwg.mxu0
    %v652 = vsel %vm168, %v571, -inf
    %653 = vmax.xlane.f32.xlu0 %v652
    %v654 = vpop.xlane.xlu0 %653
    %v655 = vsel %vm168, %v649, -inf
    %656 = vmax.xlane.f32.xlu0 %v655
    %v657 = vpop.xlane.xlu0 %656
    %v658 = vsub.f32 %v571, %v654
    %v659 = vsub.f32 %v649, %v657
    %v660 = vmul.f32 %v658, 1.442695
    %v661 = vpow.pop %v660
    %v662 = vmul.f32 %v659, 1.442695
    %v663 = vpow.pop %v662
    %v664 = vsel %vm168, %v661, 0.0
    %665 = vadd.xlane.f32.xlu0 %v664
    %v666 = vpop.xlane.xlu0 %665
    %v667 = vsel %vm168, %v663, 0.0
    %668 = vadd.xlane.f32.xlu0 %v667
    %v669 = vpop.xlane.xlu0 %668
    %v670 = vrcp.pop %v666
    %v671 = vrcp.pop %v669
    %v672 = vmul.f32 %v661, %v670
    %v673 = vmul.f32 %v663, %v671
    %v674 = vmul.f32 %v672, %v43
    %v675 = vmul.f32 %v673, %v44
    %676 = vrot.lane.b32.xlu0 %v157, 56
    %v677 = vpop.permute.xlu0 %676
    %v680 = vsel %vm168, %v674, 0
    %682 = vmatprep.subr.mxu0 0.0
    %683 = vmatpush1.msra.mxu0 %v677
    %684 = vmatprep.subr.mxu0 0.0
    %685 = vmatpush1.msra.mxu0 0.0
    %686 = vmatprep.subr.mxu0 0.0
    %687 = vmatpush1.msra.mxu0 0.0
    %688 = vmatprep.subr.mxu0 0.0
    %689 = vmatpush1.msra.mxu0 0.0
    %690 = vmatprep.subr.mxu0 0.0
    %691 = vmatpush1.msra.mxu0 0.0
    %692 = vmatprep.subr.mxu0 0.0
    %693 = vmatpush1.msra.mxu0 0.0
    %694 = vmatprep.subr.mxu0 0.0
    %695 = vmatpush1.msra.mxu0 0.0
    %696 = vmatprep.subr.mxu0 0.0
    %697 = vmatpush1.msra.mxu0 0.0
    %698 = vmatprep.subr.mxu0 0.0
    %699 = vmatpush1.msra.mxu0 0.0
    %700 = vmatprep.subr.mxu0 0.0
    %701 = vmatpush1.msra.mxu0 0.0
    %702 = vmatprep.subr.mxu0 0.0
    %703 = vmatpush1.msra.mxu0 0.0
    %704 = vmatprep.subr.mxu0 0.0
    %705 = vmatpush1.msra.mxu0 0.0
    %706 = vmatprep.subr.mxu0 0.0
    %707 = vmatpush1.msra.mxu0 0.0
    %708 = vmatprep.subr.mxu0 0.0
    %709 = vmatpush1.msra.mxu0 0.0
    %710 = vmatprep.subr.mxu0 0.0
    %711 = vmatpush1.msra.mxu0 0.0
    %712 = vmatprep.subr.mxu0 0.0
    %713 = vmatpush1.msra.mxu0 0.0
    %714 = vmatprep.subr.mxu0 0.0
    %715 = vmatpush1.msra.mxu0 0.0
    %716 = vmatprep.subr.mxu0 0.0
    %717 = vmatpush1.msra.mxu0 0.0
    %718 = vmatprep.subr.mxu0 0.0
    %719 = vmatpush1.msra.mxu0 0.0
    %720 = vmatprep.subr.mxu0 0.0
    %721 = vmatpush1.msra.mxu0 0.0
    %722 = vmatprep.subr.mxu0 0.0
    %723 = vmatpush1.msra.mxu0 0.0
    %724 = vmatprep.subr.mxu0 0.0
    %725 = vmatpush1.msra.mxu0 0.0
    %726 = vmatprep.subr.mxu0 0.0
    %727 = vmatpush1.msra.mxu0 0.0
    %728 = vmatprep.subr.mxu0 0.0
    %729 = vmatpush1.msra.mxu0 0.0
    %730 = vmatprep.subr.mxu0 0.0
    %731 = vmatpush1.msra.mxu0 0.0
    %732 = vmatprep.subr.mxu0 0.0
    %733 = vmatpush1.msra.mxu0 0.0
    %734 = vmatprep.subr.mxu0 0.0
    %735 = vmatpush1.msra.mxu0 0.0
    %736 = vmatprep.subr.mxu0 0.0
    %737 = vmatpush1.msra.mxu0 0.0
    %738 = vmatprep.subr.mxu0 0.0
    %739 = vmatpush1.msra.mxu0 0.0
    %740 = vmatprep.subr.mxu0 0.0
    %741 = vmatpush1.msra.mxu0 0.0
    %742 = vmatprep.subr.mxu0 0.0
    %743 = vmatpush1.msra.mxu0 0.0
    %744 = vmatprep.subr.mxu0 0.0
    %745 = vmatpush1.msra.mxu0 0.0
    %746 = vmatprep.mubr.f32.mxu0 0.0
    %747 = vmatmul.mubr.f32.gmra.mrb[0].mxu0 %v680
    %v748 = vpop.f32.mrb[0].mxu0
    %v749 = vadd.f32 0.0, %v748
    %v750 = vpop.f32.mrb[0].mxu0
    %751 = vdwg.mxu0
    %752 = vrot.lane.b32.xlu0 %v162, 56
    %v753 = vpop.permute.xlu0 %752
    %v756 = vsel %vm168, %v675, 0
    %758 = vmatprep.subr.mxu0 0.0
    %759 = vmatpush1.msra.mxu0 %v753
    %760 = vmatprep.subr.mxu0 0.0
    %761 = vmatpush1.msra.mxu0 0.0
    %762 = vmatprep.subr.mxu0 0.0
    %763 = vmatpush1.msra.mxu0 0.0
    %764 = vmatprep.subr.mxu0 0.0
    %765 = vmatpush1.msra.mxu0 0.0
    %766 = vmatprep.subr.mxu0 0.0
    %767 = vmatpush1.msra.mxu0 0.0
    %768 = vmatprep.subr.mxu0 0.0
    %769 = vmatpush1.msra.mxu0 0.0
    %770 = vmatprep.subr.mxu0 0.0
    %771 = vmatpush1.msra.mxu0 0.0
    %772 = vmatprep.subr.mxu0 0.0
    %773 = vmatpush1.msra.mxu0 0.0
    %774 = vmatprep.subr.mxu0 0.0
    %775 = vmatpush1.msra.mxu0 0.0
    %776 = vmatprep.subr.mxu0 0.0
    %777 = vmatpush1.msra.mxu0 0.0
    %778 = vmatprep.subr.mxu0 0.0
    %779 = vmatpush1.msra.mxu0 0.0
    %780 = vmatprep.subr.mxu0 0.0
    %781 = vmatpush1.msra.mxu0 0.0
    %782 = vmatprep.subr.mxu0 0.0
    %783 = vmatpush1.msra.mxu0 0.0
    %784 = vmatprep.subr.mxu0 0.0
    %785 = vmatpush1.msra.mxu0 0.0
    %786 = vmatprep.subr.mxu0 0.0
    %787 = vmatpush1.msra.mxu0 0.0
    %788 = vmatprep.subr.mxu0 0.0
    %789 = vmatpush1.msra.mxu0 0.0
    %790 = vmatprep.subr.mxu0 0.0
    %791 = vmatpush1.msra.mxu0 0.0
    %792 = vmatprep.subr.mxu0 0.0
    %793 = vmatpush1.msra.mxu0 0.0
    %794 = vmatprep.subr.mxu0 0.0
    %795 = vmatpush1.msra.mxu0 0.0
    %796 = vmatprep.subr.mxu0 0.0
    %797 = vmatpush1.msra.mxu0 0.0
    %798 = vmatprep.subr.mxu0 0.0
    %799 = vmatpush1.msra.mxu0 0.0
    %800 = vmatprep.subr.mxu0 0.0
    %801 = vmatpush1.msra.mxu0 0.0
    %802 = vmatprep.subr.mxu0 0.0
    %803 = vmatpush1.msra.mxu0 0.0
    %804 = vmatprep.subr.mxu0 0.0
    %805 = vmatpush1.msra.mxu0 0.0
    %806 = vmatprep.subr.mxu0 0.0
    %807 = vmatpush1.msra.mxu0 0.0
    %808 = vmatprep.subr.mxu0 0.0
    %809 = vmatpush1.msra.mxu0 0.0
    %810 = vmatprep.subr.mxu0 0.0
    %811 = vmatpush1.msra.mxu0 0.0
    %812 = vmatprep.subr.mxu0 0.0
    %813 = vmatpush1.msra.mxu0 0.0
    %814 = vmatprep.subr.mxu0 0.0
    %815 = vmatpush1.msra.mxu0 0.0
    %816 = vmatprep.subr.mxu0 0.0
    %817 = vmatpush1.msra.mxu0 0.0
    %818 = vmatprep.subr.mxu0 0.0
    %819 = vmatpush1.msra.mxu0 0.0
    %820 = vmatprep.subr.mxu0 0.0
    %821 = vmatpush1.msra.mxu0 0.0
    %822 = vmatprep.mubr.f32.mxu0 0.0
    %823 = vmatmul.mubr.f32.gmra.mrb[0].mxu0 %v756
    %v824 = vpop.f32.mrb[0].mxu0
    %v825 = vadd.f32 0.0, %v824
    %v826 = vpop.f32.mrb[0].mxu0
    %827 = vdwg.mxu0
    %828 = vrot.lane.b32.xlu0 %v157, 112
    %v829 = vpop.permute.xlu0 %828
    %830 = vrot.lane.b32.xlu0 %v157, 80
    %v831 = vpop.permute.xlu0 %830
    %v832 = vsel %vm168, %v829, 0
    %v834 = vsel %vm168, %v831, 0
    %836 = vmatprep.subr.mxu0 0.0
    %837 = vmatpush1.xpose.msra.mxu0 %v834
    %838 = vmatprep.subr.mxu0 0.0
    %839 = vmatpush1.xpose.msra.mxu0 0.0
    %840 = vmatprep.subr.mxu0 0.0
    %841 = vmatpush1.xpose.msra.mxu0 0.0
    %842 = vmatprep.subr.mxu0 0.0
    %843 = vmatpush1.xpose.msra.mxu0 0.0
    %844 = vmatprep.subr.mxu0 0.0
    %845 = vmatpush1.xpose.msra.mxu0 0.0
    %846 = vmatprep.subr.mxu0 0.0
    %847 = vmatpush1.xpose.msra.mxu0 0.0
    %848 = vmatprep.subr.mxu0 0.0
    %849 = vmatpush1.xpose.msra.mxu0 0.0
    %850 = vmatprep.subr.mxu0 0.0
    %851 = vmatpush1.xpose.msra.mxu0 0.0
    %852 = vmatprep.subr.mxu0 0.0
    %853 = vmatpush1.xpose.msra.mxu0 0.0
    %854 = vmatprep.subr.mxu0 0.0
    %855 = vmatpush1.xpose.msra.mxu0 0.0
    %856 = vmatprep.subr.mxu0 0.0
    %857 = vmatpush1.xpose.msra.mxu0 0.0
    %858 = vmatprep.subr.mxu0 0.0
    %859 = vmatpush1.xpose.msra.mxu0 0.0
    %860 = vmatprep.subr.mxu0 0.0
    %861 = vmatpush1.xpose.msra.mxu0 0.0
    %862 = vmatprep.subr.mxu0 0.0
    %863 = vmatpush1.xpose.msra.mxu0 0.0
    %864 = vmatprep.subr.mxu0 0.0
    %865 = vmatpush1.xpose.msra.mxu0 0.0
    %866 = vmatprep.subr.mxu0 0.0
    %867 = vmatpush1.xpose.msra.mxu0 0.0
    %868 = vmatprep.subr.mxu0 0.0
    %869 = vmatpush1.xpose.msra.mxu0 0.0
    %870 = vmatprep.subr.mxu0 0.0
    %871 = vmatpush1.xpose.msra.mxu0 0.0
    %872 = vmatprep.subr.mxu0 0.0
    %873 = vmatpush1.xpose.msra.mxu0 0.0
    %874 = vmatprep.subr.mxu0 0.0
    %875 = vmatpush1.xpose.msra.mxu0 0.0
    %876 = vmatprep.subr.mxu0 0.0
    %877 = vmatpush1.xpose.msra.mxu0 0.0
    %878 = vmatprep.subr.mxu0 0.0
    %879 = vmatpush1.xpose.msra.mxu0 0.0
    %880 = vmatprep.subr.mxu0 0.0
    %881 = vmatpush1.xpose.msra.mxu0 0.0
    %882 = vmatprep.subr.mxu0 0.0
    %883 = vmatpush1.xpose.msra.mxu0 0.0
    %884 = vmatprep.subr.mxu0 0.0
    %885 = vmatpush1.xpose.msra.mxu0 0.0
    %886 = vmatprep.subr.mxu0 0.0
    %887 = vmatpush1.xpose.msra.mxu0 0.0
    %888 = vmatprep.subr.mxu0 0.0
    %889 = vmatpush1.xpose.msra.mxu0 0.0
    %890 = vmatprep.subr.mxu0 0.0
    %891 = vmatpush1.xpose.msra.mxu0 0.0
    %892 = vmatprep.subr.mxu0 0.0
    %893 = vmatpush1.xpose.msra.mxu0 0.0
    %894 = vmatprep.subr.mxu0 0.0
    %895 = vmatpush1.xpose.msra.mxu0 0.0
    %896 = vmatprep.subr.mxu0 0.0
    %897 = vmatpush1.xpose.msra.mxu0 0.0
    %898 = vmatprep.subr.mxu0 0.0
    %899 = vmatpush1.xpose.msra.mxu0 0.0
    %900 = vmatprep.mubr.f32.mxu0 0.0
    %901 = vmatmul.mubr.f32.gmra.mrb[0].mxu0 %v832
    %v902 = vpop.f32.mrb[0].mxu0
    %v903 = vadd.f32 %v41, %v902
    %v904 = vpop.f32.mrb[0].mxu0
    %905 = vdwg.mxu0
    %906 = vrot.lane.b32.xlu0 %v162, 112
    %v907 = vpop.permute.xlu0 %906
    %908 = vrot.lane.b32.xlu0 %v162, 80
    %v909 = vpop.permute.xlu0 %908
    %v910 = vsel %vm168, %v907, 0
    %v912 = vsel %vm168, %v909, 0
    %914 = vmatprep.subr.mxu0 0.0
    %915 = vmatpush1.xpose.msra.mxu0 %v912
    %916 = vmatprep.subr.mxu0 0.0
    %917 = vmatpush1.xpose.msra.mxu0 0.0
    %918 = vmatprep.subr.mxu0 0.0
    %919 = vmatpush1.xpose.msra.mxu0 0.0
    %920 = vmatprep.subr.mxu0 0.0
    %921 = vmatpush1.xpose.msra.mxu0 0.0
    %922 = vmatprep.subr.mxu0 0.0
    %923 = vmatpush1.xpose.msra.mxu0 0.0
    %924 = vmatprep.subr.mxu0 0.0
    %925 = vmatpush1.xpose.msra.mxu0 0.0
    %926 = vmatprep.subr.mxu0 0.0
    %927 = vmatpush1.xpose.msra.mxu0 0.0
    %928 = vmatprep.subr.mxu0 0.0
    %929 = vmatpush1.xpose.msra.mxu0 0.0
    %930 = vmatprep.subr.mxu0 0.0
    %931 = vmatpush1.xpose.msra.mxu0 0.0
    %932 = vmatprep.subr.mxu0 0.0
    %933 = vmatpush1.xpose.msra.mxu0 0.0
    %934 = vmatprep.subr.mxu0 0.0
    %935 = vmatpush1.xpose.msra.mxu0 0.0
    %936 = vmatprep.subr.mxu0 0.0
    %937 = vmatpush1.xpose.msra.mxu0 0.0
    %938 = vmatprep.subr.mxu0 0.0
    %939 = vmatpush1.xpose.msra.mxu0 0.0
    %940 = vmatprep.subr.mxu0 0.0
    %941 = vmatpush1.xpose.msra.mxu0 0.0
    %942 = vmatprep.subr.mxu0 0.0
    %943 = vmatpush1.xpose.msra.mxu0 0.0
    %944 = vmatprep.subr.mxu0 0.0
    %945 = vmatpush1.xpose.msra.mxu0 0.0
    %946 = vmatprep.subr.mxu0 0.0
    %947 = vmatpush1.xpose.msra.mxu0 0.0
    %948 = vmatprep.subr.mxu0 0.0
    %949 = vmatpush1.xpose.msra.mxu0 0.0
    %950 = vmatprep.subr.mxu0 0.0
    %951 = vmatpush1.xpose.msra.mxu0 0.0
    %952 = vmatprep.subr.mxu0 0.0
    %953 = vmatpush1.xpose.msra.mxu0 0.0
    %954 = vmatprep.subr.mxu0 0.0
    %955 = vmatpush1.xpose.msra.mxu0 0.0
    %956 = vmatprep.subr.mxu0 0.0
    %957 = vmatpush1.xpose.msra.mxu0 0.0
    %958 = vmatprep.subr.mxu0 0.0
    %959 = vmatpush1.xpose.msra.mxu0 0.0
    %960 = vmatprep.subr.mxu0 0.0
    %961 = vmatpush1.xpose.msra.mxu0 0.0
    %962 = vmatprep.subr.mxu0 0.0
    %963 = vmatpush1.xpose.msra.mxu0 0.0
    %964 = vmatprep.subr.mxu0 0.0
    %965 = vmatpush1.xpose.msra.mxu0 0.0
    %966 = vmatprep.subr.mxu0 0.0
    %967 = vmatpush1.xpose.msra.mxu0 0.0
    %968 = vmatprep.subr.mxu0 0.0
    %969 = vmatpush1.xpose.msra.mxu0 0.0
    %970 = vmatprep.subr.mxu0 0.0
    %971 = vmatpush1.xpose.msra.mxu0 0.0
    %972 = vmatprep.subr.mxu0 0.0
    %973 = vmatpush1.xpose.msra.mxu0 0.0
    %974 = vmatprep.subr.mxu0 0.0
    %975 = vmatpush1.xpose.msra.mxu0 0.0
    %976 = vmatprep.subr.mxu0 0.0
    %977 = vmatpush1.xpose.msra.mxu0 0.0
    %978 = vmatprep.mubr.f32.mxu0 0.0
    %979 = vmatmul.mubr.f32.gmra.mrb[0].mxu0 %v910
    %v980 = vpop.f32.mrb[0].mxu0
    %v981 = vadd.f32 %v42, %v980
    %v982 = vpop.f32.mrb[0].mxu0
    %983 = vdwg.mxu0
    %v984 = vsel %vm168, %v903, -inf
    %985 = vmax.xlane.f32.xlu0 %v984
    %v986 = vpop.xlane.xlu0 %985
    %v987 = vsel %vm168, %v981, -inf
    %988 = vmax.xlane.f32.xlu0 %v987
    %v989 = vpop.xlane.xlu0 %988
    %v990 = vsub.f32 %v903, %v986
    %v991 = vsub.f32 %v981, %v989
    %v992 = vmul.f32 %v990, 1.442695
    %v993 = vpow.pop %v992
    %v994 = vmul.f32 %v991, 1.442695
    %v995 = vpow.pop %v994
    %v996 = vsel %vm168, %v993, 0.0
    %997 = vadd.xlane.f32.xlu0 %v996
    %v998 = vpop.xlane.xlu0 %997
    %v999 = vsel %vm168, %v995, 0.0
    %1000 = vadd.xlane.f32.xlu0 %v999
    %v1001 = vpop.xlane.xlu0 %1000
    %v1002 = vrcp.pop %v998
    %v1003 = vrcp.pop %v1001
    %v1004 = vmul.f32 %v993, %v1002
    %v1005 = vmul.f32 %v995, %v1003
    %v1006 = vmul.f32 %v1004, %v43
    %v1007 = vmul.f32 %v1005, %v44
    %1008 = vrot.lane.b32.xlu0 %v157, 48
    %v1009 = vpop.permute.xlu0 %1008
    %v1012 = vsel %vm168, %v1006, 0
    %1014 = vmatprep.subr.mxu0 0.0
    %1015 = vmatpush1.msra.mxu0 %v1009
    %1016 = vmatprep.subr.mxu0 0.0
    %1017 = vmatpush1.msra.mxu0 0.0
    %1018 = vmatprep.subr.mxu0 0.0
    %1019 = vmatpush1.msra.mxu0 0.0
    %1020 = vmatprep.subr.mxu0 0.0
    %1021 = vmatpush1.msra.mxu0 0.0
    %1022 = vmatprep.subr.mxu0 0.0
    %1023 = vmatpush1.msra.mxu0 0.0
    %1024 = vmatprep.subr.mxu0 0.0
    %1025 = vmatpush1.msra.mxu0 0.0
    %1026 = vmatprep.subr.mxu0 0.0
    %1027 = vmatpush1.msra.mxu0 0.0
    %1028 = vmatprep.subr.mxu0 0.0
    %1029 = vmatpush1.msra.mxu0 0.0
    %1030 = vmatprep.subr.mxu0 0.0
    %1031 = vmatpush1.msra.mxu0 0.0
    %1032 = vmatprep.subr.mxu0 0.0
    %1033 = vmatpush1.msra.mxu0 0.0
    %1034 = vmatprep.subr.mxu0 0.0
    %1035 = vmatpush1.msra.mxu0 0.0
    %1036 = vmatprep.subr.mxu0 0.0
    %1037 = vmatpush1.msra.mxu0 0.0
    %1038 = vmatprep.subr.mxu0 0.0
    %1039 = vmatpush1.msra.mxu0 0.0
    %1040 = vmatprep.subr.mxu0 0.0
    %1041 = vmatpush1.msra.mxu0 0.0
    %1042 = vmatprep.subr.mxu0 0.0
    %1043 = vmatpush1.msra.mxu0 0.0
    %1044 = vmatprep.subr.mxu0 0.0
    %1045 = vmatpush1.msra.mxu0 0.0
    %1046 = vmatprep.subr.mxu0 0.0
    %1047 = vmatpush1.msra.mxu0 0.0
    %1048 = vmatprep.subr.mxu0 0.0
    %1049 = vmatpush1.msra.mxu0 0.0
    %1050 = vmatprep.subr.mxu0 0.0
    %1051 = vmatpush1.msra.mxu0 0.0
    %1052 = vmatprep.subr.mxu0 0.0
    %1053 = vmatpush1.msra.mxu0 0.0
    %1054 = vmatprep.subr.mxu0 0.0
    %1055 = vmatpush1.msra.mxu0 0.0
    %1056 = vmatprep.subr.mxu0 0.0
    %1057 = vmatpush1.msra.mxu0 0.0
    %1058 = vmatprep.subr.mxu0 0.0
    %1059 = vmatpush1.msra.mxu0 0.0
    %1060 = vmatprep.subr.mxu0 0.0
    %1061 = vmatpush1.msra.mxu0 0.0
    %1062 = vmatprep.subr.mxu0 0.0
    %1063 = vmatpush1.msra.mxu0 0.0
    %1064 = vmatprep.subr.mxu0 0.0
    %1065 = vmatpush1.msra.mxu0 0.0
    %1066 = vmatprep.subr.mxu0 0.0
    %1067 = vmatpush1.msra.mxu0 0.0
    %1068 = vmatprep.subr.mxu0 0.0
    %1069 = vmatpush1.msra.mxu0 0.0
    %1070 = vmatprep.subr.mxu0 0.0
    %1071 = vmatpush1.msra.mxu0 0.0
    %1072 = vmatprep.subr.mxu0 0.0
    %1073 = vmatpush1.msra.mxu0 0.0
    %1074 = vmatprep.subr.mxu0 0.0
    %1075 = vmatpush1.msra.mxu0 0.0
    %1076 = vmatprep.subr.mxu0 0.0
    %1077 = vmatpush1.msra.mxu0 0.0
    %1078 = vmatprep.mubr.f32.mxu0 0.0
    %1079 = vmatmul.mubr.f32.gmra.mrb[0].mxu0 %v1012
    %v1080 = vpop.f32.mrb[0].mxu0
    %v1081 = vadd.f32 0.0, %v1080
    %v1082 = vpop.f32.mrb[0].mxu0
    %1083 = vdwg.mxu0
    %1084 = vrot.lane.b32.xlu0 %v162, 48
    %v1085 = vpop.permute.xlu0 %1084
    %v1088 = vsel %vm168, %v1007, 0
    %1090 = vmatprep.subr.mxu0 0.0
    %1091 = vmatpush1.msra.mxu0 %v1085
    %1092 = vmatprep.subr.mxu0 0.0
    %1093 = vmatpush1.msra.mxu0 0.0
    %1094 = vmatprep.subr.mxu0 0.0
    %1095 = vmatpush1.msra.mxu0 0.0
    %1096 = vmatprep.subr.mxu0 0.0
    %1097 = vmatpush1.msra.mxu0 0.0
    %1098 = vmatprep.subr.mxu0 0.0
    %1099 = vmatpush1.msra.mxu0 0.0
    %1100 = vmatprep.subr.mxu0 0.0
    %1101 = vmatpush1.msra.mxu0 0.0
    %1102 = vmatprep.subr.mxu0 0.0
    %1103 = vmatpush1.msra.mxu0 0.0
    %1104 = vmatprep.subr.mxu0 0.0
    %1105 = vmatpush1.msra.mxu0 0.0
    %1106 = vmatprep.subr.mxu0 0.0
    %1107 = vmatpush1.msra.mxu0 0.0
    %1108 = vmatprep.subr.mxu0 0.0
    %1109 = vmatpush1.msra.mxu0 0.0
    %1110 = vmatprep.subr.mxu0 0.0
    %1111 = vmatpush1.msra.mxu0 0.0
    %1112 = vmatprep.subr.mxu0 0.0
    %1113 = vmatpush1.msra.mxu0 0.0
    %1114 = vmatprep.subr.mxu0 0.0
    %1115 = vmatpush1.msra.mxu0 0.0
    %1116 = vmatprep.subr.mxu0 0.0
    %1117 = vmatpush1.msra.mxu0 0.0
    %1118 = vmatprep.subr.mxu0 0.0
    %1119 = vmatpush1.msra.mxu0 0.0
    %1120 = vmatprep.subr.mxu0 0.0
    %1121 = vmatpush1.msra.mxu0 0.0
    %1122 = vmatprep.subr.mxu0 0.0
    %1123 = vmatpush1.msra.mxu0 0.0
    %1124 = vmatprep.subr.mxu0 0.0
    %1125 = vmatpush1.msra.mxu0 0.0
    %1126 = vmatprep.subr.mxu0 0.0
    %1127 = vmatpush1.msra.mxu0 0.0
    %1128 = vmatprep.subr.mxu0 0.0
    %1129 = vmatpush1.msra.mxu0 0.0
    %1130 = vmatprep.subr.mxu0 0.0
    %1131 = vmatpush1.msra.mxu0 0.0
    %1132 = vmatprep.subr.mxu0 0.0
    %1133 = vmatpush1.msra.mxu0 0.0
    %1134 = vmatprep.subr.mxu0 0.0
    %1135 = vmatpush1.msra.mxu0 0.0
    %1136 = vmatprep.subr.mxu0 0.0
    %1137 = vmatpush1.msra.mxu0 0.0
    %1138 = vmatprep.subr.mxu0 0.0
    %1139 = vmatpush1.msra.mxu0 0.0
    %1140 = vmatprep.subr.mxu0 0.0
    %1141 = vmatpush1.msra.mxu0 0.0
    %1142 = vmatprep.subr.mxu0 0.0
    %1143 = vmatpush1.msra.mxu0 0.0
    %1144 = vmatprep.subr.mxu0 0.0
    %1145 = vmatpush1.msra.mxu0 0.0
    %1146 = vmatprep.subr.mxu0 0.0
    %1147 = vmatpush1.msra.mxu0 0.0
    %1148 = vmatprep.subr.mxu0 0.0
    %1149 = vmatpush1.msra.mxu0 0.0
    %1150 = vmatprep.subr.mxu0 0.0
    %1151 = vmatpush1.msra.mxu0 0.0
    %1152 = vmatprep.subr.mxu0 0.0
    %1153 = vmatpush1.msra.mxu0 0.0
    %1154 = vmatprep.mubr.f32.mxu0 0.0
    %1155 = vmatmul.mubr.f32.gmra.mrb[0].mxu0 %v1088
    %v1156 = vpop.f32.mrb[0].mxu0
    %v1157 = vadd.f32 0.0, %v1156
    %v1158 = vpop.f32.mrb[0].mxu0
    %1159 = vdwg.mxu0
    %1160 = vrot.lane.b32.xlu0 %v157, 104
    %v1161 = vpop.permute.xlu0 %1160
    %1162 = vrot.lane.b32.xlu0 %v157, 72
    %v1163 = vpop.permute.xlu0 %1162
    %v1164 = vsel %vm168, %v1161, 0
    %v1166 = vsel %vm168, %v1163, 0
    %1168 = vmatprep.subr.mxu0 0.0
    %1169 = vmatpush1.xpose.msra.mxu0 %v1166
    %1170 = vmatprep.subr.mxu0 0.0
    %1171 = vmatpush1.xpose.msra.mxu0 0.0
    %1172 = vmatprep.subr.mxu0 0.0
    %1173 = vmatpush1.xpose.msra.mxu0 0.0
    %1174 = vmatprep.subr.mxu0 0.0
    %1175 = vmatpush1.xpose.msra.mxu0 0.0
    %1176 = vmatprep.subr.mxu0 0.0
    %1177 = vmatpush1.xpose.msra.mxu0 0.0
    %1178 = vmatprep.subr.mxu0 0.0
    %1179 = vmatpush1.xpose.msra.mxu0 0.0
    %1180 = vmatprep.subr.mxu0 0.0
    %1181 = vmatpush1.xpose.msra.mxu0 0.0
    %1182 = vmatprep.subr.mxu0 0.0
    %1183 = vmatpush1.xpose.msra.mxu0 0.0
    %1184 = vmatprep.subr.mxu0 0.0
    %1185 = vmatpush1.xpose.msra.mxu0 0.0
    %1186 = vmatprep.subr.mxu0 0.0
    %1187 = vmatpush1.xpose.msra.mxu0 0.0
    %1188 = vmatprep.subr.mxu0 0.0
    %1189 = vmatpush1.xpose.msra.mxu0 0.0
    %1190 = vmatprep.subr.mxu0 0.0
    %1191 = vmatpush1.xpose.msra.mxu0 0.0
    %1192 = vmatprep.subr.mxu0 0.0
    %1193 = vmatpush1.xpose.msra.mxu0 0.0
    %1194 = vmatprep.subr.mxu0 0.0
    %1195 = vmatpush1.xpose.msra.mxu0 0.0
    %1196 = vmatprep.subr.mxu0 0.0
    %1197 = vmatpush1.xpose.msra.mxu0 0.0
    %1198 = vmatprep.subr.mxu0 0.0
    %1199 = vmatpush1.xpose.msra.mxu0 0.0
    %1200 = vmatprep.subr.mxu0 0.0
    %1201 = vmatpush1.xpose.msra.mxu0 0.0
    %1202 = vmatprep.subr.mxu0 0.0
    %1203 = vmatpush1.xpose.msra.mxu0 0.0
    %1204 = vmatprep.subr.mxu0 0.0
    %1205 = vmatpush1.xpose.msra.mxu0 0.0
    %1206 = vmatprep.subr.mxu0 0.0
    %1207 = vmatpush1.xpose.msra.mxu0 0.0
    %1208 = vmatprep.subr.mxu0 0.0
    %1209 = vmatpush1.xpose.msra.mxu0 0.0
    %1210 = vmatprep.subr.mxu0 0.0
    %1211 = vmatpush1.xpose.msra.mxu0 0.0
    %1212 = vmatprep.subr.mxu0 0.0
    %1213 = vmatpush1.xpose.msra.mxu0 0.0
    %1214 = vmatprep.subr.mxu0 0.0
    %1215 = vmatpush1.xpose.msra.mxu0 0.0
    %1216 = vmatprep.subr.mxu0 0.0
    %1217 = vmatpush1.xpose.msra.mxu0 0.0
    %1218 = vmatprep.subr.mxu0 0.0
    %1219 = vmatpush1.xpose.msra.mxu0 0.0
    %1220 = vmatprep.subr.mxu0 0.0
    %1221 = vmatpush1.xpose.msra.mxu0 0.0
    %1222 = vmatprep.subr.mxu0 0.0
    %1223 = vmatpush1.xpose.msra.mxu0 0.0
    %1224 = vmatprep.subr.mxu0 0.0
    %1225 = vmatpush1.xpose.msra.mxu0 0.0
    %1226 = vmatprep.subr.mxu0 0.0
    %1227 = vmatpush1.xpose.msra.mxu0 0.0
    %1228 = vmatprep.subr.mxu0 0.0
    %1229 = vmatpush1.xpose.msra.mxu0 0.0
    %1230 = vmatprep.subr.mxu0 0.0
    %1231 = vmatpush1.xpose.msra.mxu0 0.0
    %1232 = vmatprep.mubr.f32.mxu0 0.0
    %1233 = vmatmul.mubr.f32.gmra.mrb[0].mxu0 %v1164
    %v1234 = vpop.f32.mrb[0].mxu0
    %v1235 = vadd.f32 %v41, %v1234
    %v1236 = vpop.f32.mrb[0].mxu0
    %1237 = vdwg.mxu0
    %1238 = vrot.lane.b32.xlu0 %v162, 104
    %v1239 = vpop.permute.xlu0 %1238
    %1240 = vrot.lane.b32.xlu0 %v162, 72
    %v1241 = vpop.permute.xlu0 %1240
    %v1242 = vsel %vm168, %v1239, 0
    %v1244 = vsel %vm168, %v1241, 0
    %1246 = vmatprep.subr.mxu0 0.0
    %1247 = vmatpush1.xpose.msra.mxu0 %v1244
    %1248 = vmatprep.subr.mxu0 0.0
    %1249 = vmatpush1.xpose.msra.mxu0 0.0
    %1250 = vmatprep.subr.mxu0 0.0
    %1251 = vmatpush1.xpose.msra.mxu0 0.0
    %1252 = vmatprep.subr.mxu0 0.0
    %1253 = vmatpush1.xpose.msra.mxu0 0.0
    %1254 = vmatprep.subr.mxu0 0.0
    %1255 = vmatpush1.xpose.msra.mxu0 0.0
    %1256 = vmatprep.subr.mxu0 0.0
    %1257 = vmatpush1.xpose.msra.mxu0 0.0
    %1258 = vmatprep.subr.mxu0 0.0
    %1259 = vmatpush1.xpose.msra.mxu0 0.0
    %1260 = vmatprep.subr.mxu0 0.0
    %1261 = vmatpush1.xpose.msra.mxu0 0.0
    %1262 = vmatprep.subr.mxu0 0.0
    %1263 = vmatpush1.xpose.msra.mxu0 0.0
    %1264 = vmatprep.subr.mxu0 0.0
    %1265 = vmatpush1.xpose.msra.mxu0 0.0
    %1266 = vmatprep.subr.mxu0 0.0
    %1267 = vmatpush1.xpose.msra.mxu0 0.0
    %1268 = vmatprep.subr.mxu0 0.0
    %1269 = vmatpush1.xpose.msra.mxu0 0.0
    %1270 = vmatprep.subr.mxu0 0.0
    %1271 = vmatpush1.xpose.msra.mxu0 0.0
    %1272 = vmatprep.subr.mxu0 0.0
    %1273 = vmatpush1.xpose.msra.mxu0 0.0
    %1274 = vmatprep.subr.mxu0 0.0
    %1275 = vmatpush1.xpose.msra.mxu0 0.0
    %1276 = vmatprep.subr.mxu0 0.0
    %1277 = vmatpush1.xpose.msra.mxu0 0.0
    %1278 = vmatprep.subr.mxu0 0.0
    %1279 = vmatpush1.xpose.msra.mxu0 0.0
    %1280 = vmatprep.subr.mxu0 0.0
    %1281 = vmatpush1.xpose.msra.mxu0 0.0
    %1282 = vmatprep.subr.mxu0 0.0
    %1283 = vmatpush1.xpose.msra.mxu0 0.0
    %1284 = vmatprep.subr.mxu0 0.0
    %1285 = vmatpush1.xpose.msra.mxu0 0.0
    %1286 = vmatprep.subr.mxu0 0.0
    %1287 = vmatpush1.xpose.msra.mxu0 0.0
    %1288 = vmatprep.subr.mxu0 0.0
    %1289 = vmatpush1.xpose.msra.mxu0 0.0
    %1290 = vmatprep.subr.mxu0 0.0
    %1291 = vmatpush1.xpose.msra.mxu0 0.0
    %1292 = vmatprep.subr.mxu0 0.0
    %1293 = vmatpush1.xpose.msra.mxu0 0.0
    %1294 = vmatprep.subr.mxu0 0.0
    %1295 = vmatpush1.xpose.msra.mxu0 0.0
    %1296 = vmatprep.subr.mxu0 0.0
    %1297 = vmatpush1.xpose.msra.mxu0 0.0
    %1298 = vmatprep.subr.mxu0 0.0
    %1299 = vmatpush1.xpose.msra.mxu0 0.0
    %1300 = vmatprep.subr.mxu0 0.0
    %1301 = vmatpush1.xpose.msra.mxu0 0.0
    %1302 = vmatprep.subr.mxu0 0.0
    %1303 = vmatpush1.xpose.msra.mxu0 0.0
    %1304 = vmatprep.subr.mxu0 0.0
    %1305 = vmatpush1.xpose.msra.mxu0 0.0
    %1306 = vmatprep.subr.mxu0 0.0
    %1307 = vmatpush1.xpose.msra.mxu0 0.0
    %1308 = vmatprep.subr.mxu0 0.0
    %1309 = vmatpush1.xpose.msra.mxu0 0.0
    %1310 = vmatprep.mubr.f32.mxu0 0.0
    %1311 = vmatmul.mubr.f32.gmra.mrb[0].mxu0 %v1242
    %v1312 = vpop.f32.mrb[0].mxu0
    %v1313 = vadd.f32 %v42, %v1312
    %v1314 = vpop.f32.mrb[0].mxu0
    %1315 = vdwg.mxu0
    %v1316 = vsel %vm168, %v1235, -inf
    %1317 = vmax.xlane.f32.xlu0 %v1316
    %v1318 = vpop.xlane.xlu0 %1317
    %v1319 = vsel %vm168, %v1313, -inf
    %1320 = vmax.xlane.f32.xlu0 %v1319
    %v1321 = vpop.xlane.xlu0 %1320
    %v1322 = vsub.f32 %v1235, %v1318
    %v1323 = vsub.f32 %v1313, %v1321
    %v1324 = vmul.f32 %v1322, 1.442695
    %v1325 = vpow.pop %v1324
    %v1326 = vmul.f32 %v1323, 1.442695
    %v1327 = vpow.pop %v1326
    %v1328 = vsel %vm168, %v1325, 0.0
    %1329 = vadd.xlane.f32.xlu0 %v1328
    %v1330 = vpop.xlane.xlu0 %1329
    %v1331 = vsel %vm168, %v1327, 0.0
    %1332 = vadd.xlane.f32.xlu0 %v1331
    %v1333 = vpop.xlane.xlu0 %1332
    %v1334 = vrcp.pop %v1330
    %v1335 = vrcp.pop %v1333
    %v1336 = vmul.f32 %v1325, %v1334
    %v1337 = vmul.f32 %v1327, %v1335
    %v1338 = vmul.f32 %v1336, %v43
    %v1339 = vmul.f32 %v1337, %v44
    %1340 = vrot.lane.b32.xlu0 %v157, 40
    %v1341 = vpop.permute.xlu0 %1340
    %v1344 = vsel %vm168, %v1338, 0
    %1346 = vmatprep.subr.mxu0 0.0
    %1347 = vmatpush1.msra.mxu0 %v1341
    %1348 = vmatprep.subr.mxu0 0.0
    %1349 = vmatpush1.msra.mxu0 0.0
    %1350 = vmatprep.subr.mxu0 0.0
    %1351 = vmatpush1.msra.mxu0 0.0
    %1352 = vmatprep.subr.mxu0 0.0
    %1353 = vmatpush1.msra.mxu0 0.0
    %1354 = vmatprep.subr.mxu0 0.0
    %1355 = vmatpush1.msra.mxu0 0.0
    %1356 = vmatprep.subr.mxu0 0.0
    %1357 = vmatpush1.msra.mxu0 0.0
    %1358 = vmatprep.subr.mxu0 0.0
    %1359 = vmatpush1.msra.mxu0 0.0
    %1360 = vmatprep.subr.mxu0 0.0
    %1361 = vmatpush1.msra.mxu0 0.0
    %1362 = vmatprep.subr.mxu0 0.0
    %1363 = vmatpush1.msra.mxu0 0.0
    %1364 = vmatprep.subr.mxu0 0.0
    %1365 = vmatpush1.msra.mxu0 0.0
    %1366 = vmatprep.subr.mxu0 0.0
    %1367 = vmatpush1.msra.mxu0 0.0
    %1368 = vmatprep.subr.mxu0 0.0
    %1369 = vmatpush1.msra.mxu0 0.0
    %1370 = vmatprep.subr.mxu0 0.0
    %1371 = vmatpush1.msra.mxu0 0.0
    %1372 = vmatprep.subr.mxu0 0.0
    %1373 = vmatpush1.msra.mxu0 0.0
    %1374 = vmatprep.subr.mxu0 0.0
    %1375 = vmatpush1.msra.mxu0 0.0
    %1376 = vmatprep.subr.mxu0 0.0
    %1377 = vmatpush1.msra.mxu0 0.0
    %1378 = vmatprep.subr.mxu0 0.0
    %1379 = vmatpush1.msra.mxu0 0.0
    %1380 = vmatprep.subr.mxu0 0.0
    %1381 = vmatpush1.msra.mxu0 0.0
    %1382 = vmatprep.subr.mxu0 0.0
    %1383 = vmatpush1.msra.mxu0 0.0
    %1384 = vmatprep.subr.mxu0 0.0
    %1385 = vmatpush1.msra.mxu0 0.0
    %1386 = vmatprep.subr.mxu0 0.0
    %1387 = vmatpush1.msra.mxu0 0.0
    %1388 = vmatprep.subr.mxu0 0.0
    %1389 = vmatpush1.msra.mxu0 0.0
    %1390 = vmatprep.subr.mxu0 0.0
    %1391 = vmatpush1.msra.mxu0 0.0
    %1392 = vmatprep.subr.mxu0 0.0
    %1393 = vmatpush1.msra.mxu0 0.0
    %1394 = vmatprep.subr.mxu0 0.0
    %1395 = vmatpush1.msra.mxu0 0.0
    %1396 = vmatprep.subr.mxu0 0.0
    %1397 = vmatpush1.msra.mxu0 0.0
    %1398 = vmatprep.subr.mxu0 0.0
    %1399 = vmatpush1.msra.mxu0 0.0
    %1400 = vmatprep.subr.mxu0 0.0
    %1401 = vmatpush1.msra.mxu0 0.0
    %1402 = vmatprep.subr.mxu0 0.0
    %1403 = vmatpush1.msra.mxu0 0.0
    %1404 = vmatprep.subr.mxu0 0.0
    %1405 = vmatpush1.msra.mxu0 0.0
    %1406 = vmatprep.subr.mxu0 0.0
    %1407 = vmatpush1.msra.mxu0 0.0
    %1408 = vmatprep.subr.mxu0 0.0
    %1409 = vmatpush1.msra.mxu0 0.0
    %1410 = vmatprep.mubr.f32.mxu0 0.0
    %1411 = vmatmul.mubr.f32.gmra.mrb[0].mxu0 %v1344
    %v1412 = vpop.f32.mrb[0].mxu0
    %v1413 = vadd.f32 0.0, %v1412
    %v1414 = vpop.f32.mrb[0].mxu0
    %1415 = vdwg.mxu0
    %1416 = vrot.lane.b32.xlu0 %v162, 40
    %v1417 = vpop.permute.xlu0 %1416
    %v1420 = vsel %vm168, %v1339, 0
    %1422 = vmatprep.subr.mxu0 0.0
    %1423 = vmatpush1.msra.mxu0 %v1417
    %1424 = vmatprep.subr.mxu0 0.0
    %1425 = vmatpush1.msra.mxu0 0.0
    %1426 = vmatprep.subr.mxu0 0.0
    %1427 = vmatpush1.msra.mxu0 0.0
    %1428 = vmatprep.subr.mxu0 0.0
    %1429 = vmatpush1.msra.mxu0 0.0
    %1430 = vmatprep.subr.mxu0 0.0
    %1431 = vmatpush1.msra.mxu0 0.0
    %1432 = vmatprep.subr.mxu0 0.0
    %1433 = vmatpush1.msra.mxu0 0.0
    %1434 = vmatprep.subr.mxu0 0.0
    %1435 = vmatpush1.msra.mxu0 0.0
    %1436 = vmatprep.subr.mxu0 0.0
    %1437 = vmatpush1.msra.mxu0 0.0
    %1438 = vmatprep.subr.mxu0 0.0
    %1439 = vmatpush1.msra.mxu0 0.0
    %1440 = vmatprep.subr.mxu0 0.0
    %1441 = vmatpush1.msra.mxu0 0.0
    %1442 = vmatprep.subr.mxu0 0.0
    %1443 = vmatpush1.msra.mxu0 0.0
    %1444 = vmatprep.subr.mxu0 0.0
    %1445 = vmatpush1.msra.mxu0 0.0
    %1446 = vmatprep.subr.mxu0 0.0
    %1447 = vmatpush1.msra.mxu0 0.0
    %1448 = vmatprep.subr.mxu0 0.0
    %1449 = vmatpush1.msra.mxu0 0.0
    %1450 = vmatprep.subr.mxu0 0.0
    %1451 = vmatpush1.msra.mxu0 0.0
    %1452 = vmatprep.subr.mxu0 0.0
    %1453 = vmatpush1.msra.mxu0 0.0
    %1454 = vmatprep.subr.mxu0 0.0
    %1455 = vmatpush1.msra.mxu0 0.0
    %1456 = vmatprep.subr.mxu0 0.0
    %1457 = vmatpush1.msra.mxu0 0.0
    %1458 = vmatprep.subr.mxu0 0.0
    %1459 = vmatpush1.msra.mxu0 0.0
    %1460 = vmatprep.subr.mxu0 0.0
    %1461 = vmatpush1.msra.mxu0 0.0
    %1462 = vmatprep.subr.mxu0 0.0
    %1463 = vmatpush1.msra.mxu0 0.0
    %1464 = vmatprep.subr.mxu0 0.0
    %1465 = vmatpush1.msra.mxu0 0.0
    %1466 = vmatprep.subr.mxu0 0.0
    %1467 = vmatpush1.msra.mxu0 0.0
    %1468 = vmatprep.subr.mxu0 0.0
    %1469 = vmatpush1.msra.mxu0 0.0
    %1470 = vmatprep.subr.mxu0 0.0
    %1471 = vmatpush1.msra.mxu0 0.0
    %1472 = vmatprep.subr.mxu0 0.0
    %1473 = vmatpush1.msra.mxu0 0.0
    %1474 = vmatprep.subr.mxu0 0.0
    %1475 = vmatpush1.msra.mxu0 0.0
    %1476 = vmatprep.subr.mxu0 0.0
    %1477 = vmatpush1.msra.mxu0 0.0
    %1478 = vmatprep.subr.mxu0 0.0
    %1479 = vmatpush1.msra.mxu0 0.0
    %1480 = vmatprep.subr.mxu0 0.0
    %1481 = vmatpush1.msra.mxu0 0.0
    %1482 = vmatprep.subr.mxu0 0.0
    %1483 = vmatpush1.msra.mxu0 0.0
    %1484 = vmatprep.subr.mxu0 0.0
    %1485 = vmatpush1.msra.mxu0 0.0
    %1486 = vmatprep.mubr.f32.mxu0 0.0
    %1487 = vmatmul.mubr.f32.gmra.mrb[0].mxu0 %v1420
    %v1488 = vpop.f32.mrb[0].mxu0
    %v1489 = vadd.f32 0.0, %v1488
    %v1490 = vpop.f32.mrb[0].mxu0
    %1491 = vdwg.mxu0
    %1494 = vrot.lane.b32.xlu0 %v749, 8
    %v1495 = vpop.permute.xlu0 %1494
    %1496 = vrot.lane.b32.xlu0 %v825, 8
    %v1497 = vpop.permute.xlu0 %1496
    %1502 = vrot.lane.b32.xlu0 %v1081, 16
    %v1503 = vpop.permute.xlu0 %1502
    %1504 = vrot.lane.b32.xlu0 %v1157, 16
    %v1505 = vpop.permute.xlu0 %1504
    %1510 = vrot.lane.b32.xlu0 %v1413, 24
    %v1511 = vpop.permute.xlu0 %1510
    %1512 = vrot.lane.b32.xlu0 %v1489, 24
    %v1513 = vpop.permute.xlu0 %1512
    %v1516 = vsel %vm168, %v417, %v1495
    %v1517 = vsel %vm168, %v493, %v1497
    %vm1518 = vcmask 130048
    %v1519 = vsel %vm1518, %v1516, %v1503
    %v1520 = vsel %vm1518, %v1517, %v1505
    %vm1521 = vcmask 195584
    %v1522 = vsel %vm1521, %v1519, %v1511
    %v1523 = vsel %vm1521, %v1520, %v1513
    %v1524 = vld [vmem:[%s5] sm:$0xff]
    %v1525 = vld [vmem:[%s5 + $0x8] sm:$0xff]
    %v1526 = vld [vmem:[%s5 + $0x10] sm:$0xff]
    %v1527 = vld [vmem:[%s5 + $0x18] sm:$0xff]
    %v1528 = vld [vmem:[%s6] sm:$0x1]
    %v1530 = vlaneseq
    %v1531 = vshrl.u32 %v1530, 7
    %v1532 = vsub.s32 0, %v1531
    %v1533 = vrot.slane %v1528, %v1532
    %v1536 = vsel %vm45, %v1522, 0
    %v1539 = vsel %vm45, %v1523, 0
    %1541 = vmatprep.subr.mxu0 0.0
    %1542 = vmatpush1.msra.mxu0 %v1524
    %1543 = vmatprep.subr.mxu0 0.0
    %1544 = vmatpush1.msra.mxu0 %v1525
    %1545 = vmatprep.subr.mxu0 0.0
    %1546 = vmatpush1.msra.mxu0 %v1526
    %1547 = vmatprep.subr.mxu0 0.0
    %1548 = vmatpush1.msra.mxu0 %v1527
    %1549 = vmatprep.subr.mxu0 0.0
    %1550 = vmatpush1.msra.mxu0 0.0
    %1551 = vmatprep.subr.mxu0 0.0
    %1552 = vmatpush1.msra.mxu0 0.0
    %1553 = vmatprep.subr.mxu0 0.0
    %1554 = vmatpush1.msra.mxu0 0.0
    %1555 = vmatprep.subr.mxu0 0.0
    %1556 = vmatpush1.msra.mxu0 0.0
    %1557 = vmatprep.subr.mxu0 0.0
    %1558 = vmatpush1.msra.mxu0 0.0
    %1559 = vmatprep.subr.mxu0 0.0
    %1560 = vmatpush1.msra.mxu0 0.0
    %1561 = vmatprep.subr.mxu0 0.0
    %1562 = vmatpush1.msra.mxu0 0.0
    %1563 = vmatprep.subr.mxu0 0.0
    %1564 = vmatpush1.msra.mxu0 0.0
    %1565 = vmatprep.subr.mxu0 0.0
    %1566 = vmatpush1.msra.mxu0 0.0
    %1567 = vmatprep.subr.mxu0 0.0
    %1568 = vmatpush1.msra.mxu0 0.0
    %1569 = vmatprep.subr.mxu0 0.0
    %1570 = vmatpush1.msra.mxu0 0.0
    %1571 = vmatprep.subr.mxu0 0.0
    %1572 = vmatpush1.msra.mxu0 0.0
    %1573 = vmatprep.subr.mxu0 0.0
    %1574 = vmatpush1.msra.mxu0 0.0
    %1575 = vmatprep.subr.mxu0 0.0
    %1576 = vmatpush1.msra.mxu0 0.0
    %1577 = vmatprep.subr.mxu0 0.0
    %1578 = vmatpush1.msra.mxu0 0.0
    %1579 = vmatprep.subr.mxu0 0.0
    %1580 = vmatpush1.msra.mxu0 0.0
    %1581 = vmatprep.subr.mxu0 0.0
    %1582 = vmatpush1.msra.mxu0 0.0
    %1583 = vmatprep.subr.mxu0 0.0
    %1584 = vmatpush1.msra.mxu0 0.0
    %1585 = vmatprep.subr.mxu0 0.0
    %1586 = vmatpush1.msra.mxu0 0.0
    %1587 = vmatprep.subr.mxu0 0.0
    %1588 = vmatpush1.msra.mxu0 0.0
    %1589 = vmatprep.subr.mxu0 0.0
    %1590 = vmatpush1.msra.mxu0 0.0
    %1591 = vmatprep.subr.mxu0 0.0
    %1592 = vmatpush1.msra.mxu0 0.0
    %1593 = vmatprep.subr.mxu0 0.0
    %1594 = vmatpush1.msra.mxu0 0.0
    %1595 = vmatprep.subr.mxu0 0.0
    %1596 = vmatpush1.msra.mxu0 0.0
    %1597 = vmatprep.subr.mxu0 0.0
    %1598 = vmatpush1.msra.mxu0 0.0
    %1599 = vmatprep.subr.mxu0 0.0
    %1600 = vmatpush1.msra.mxu0 0.0
    %1601 = vmatprep.subr.mxu0 0.0
    %1602 = vmatpush1.msra.mxu0 0.0
    %1603 = vmatprep.subr.mxu0 0.0
    %1604 = vmatpush1.msra.mxu0 0.0
    %1605 = vmatprep.mubr.f32.mxu0 0.0
    %1606 = vmatmul.mubr.f32.gmra.mrb[0].mxu0 %v1536
    %v1607 = vpop.f32.mrb[0].mxu0
    %v1608 = vadd.f32 %v1533, %v1607
    %v1609 = vpop.f32.mrb[0].mxu0
    %1610 = vmatprep.mubr.f32.mxu0 0.0
    %1611 = vmatmul.mubr.f32.gmra.mrb[0].mxu0 %v1539
    %v1612 = vpop.f32.mrb[0].mxu0
    %v1613 = vadd.f32 %v1533, %v1612
    %v1614 = vpop.f32.mrb[0].mxu0
    %1615 = vdwg.mxu0
    %v1616 = vadd.f32 %v39, %v1608
    %v1617 = vadd.f32 %v40, %v1613
    %v1618 = vsel %vm45, %v1616, 0.0
    %1619 = vadd.xlane.f32.xlu0 %v1618
    %v1620 = vpop.xlane.xlu0 %1619
    %v1621 = vsel %vm45, %v1617, 0.0
    %1622 = vadd.xlane.f32.xlu0 %v1621
    %v1623 = vpop.xlane.xlu0 %1622
    %v1624 = vmul.f32 %v1620, %v52
    %v1625 = vmul.f32 %v1623, %v52
    %v1626 = vsub.f32 %v1616, %v1624
    %v1627 = vsub.f32 %v1617, %v1625
    %v1628 = vmul.f32 %v1626, %v1626
    %v1629 = vmul.f32 %v1627, %v1627
    %v1630 = vsel %vm45, %v1628, 0.0
    %1631 = vadd.xlane.f32.xlu0 %v1630
    %v1632 = vpop.xlane.xlu0 %1631
    %v1633 = vsel %vm45, %v1629, 0.0
    %1634 = vadd.xlane.f32.xlu0 %v1633
    %v1635 = vpop.xlane.xlu0 %1634
    %v1636 = vmul.f32 %v1632, %v52
    %v1637 = vmul.f32 %v1635, %v52
    %v1638 = vadd.f32 %v1636, 1e-05
    %v1639 = vadd.f32 %v1637, 1e-05
    %v1640 = vrsqrt.pop %v1638
    %v1641 = vrsqrt.pop %v1639
    %v1642 = vmul.f32 %v1626, %v1640
    %v1643 = vmul.f32 %v1627, %v1641
    %v1644 = vld [vmem:[%s7] sm:$0xff]
    %v1645 = vld [vmem:[%s7 + $0x8] sm:$0xff]
    %v1646 = vld [vmem:[%s7 + $0x10] sm:$0xff]
    %v1647 = vld [vmem:[%s7 + $0x18] sm:$0xff]
    %v1648 = vld [vmem:[%s8] sm:$0x1]
    %v1650 = vlaneseq
    %v1651 = vshrl.u32 %v1650, 7
    %v1652 = vsub.s32 0, %v1651
    %v1653 = vrot.slane %v1648, %v1652
    %v1656 = vsel %vm45, %v1642, 0
    %v1659 = vsel %vm45, %v1643, 0
    %1661 = vmatprep.subr.mxu0 0.0
    %1662 = vmatpush1.msra.mxu0 %v1644
    %1663 = vmatprep.subr.mxu0 0.0
    %1664 = vmatpush1.msra.mxu0 %v1645
    %1665 = vmatprep.subr.mxu0 0.0
    %1666 = vmatpush1.msra.mxu0 %v1646
    %1667 = vmatprep.subr.mxu0 0.0
    %1668 = vmatpush1.msra.mxu0 %v1647
    %1669 = vmatprep.subr.mxu0 0.0
    %1670 = vmatpush1.msra.mxu0 0.0
    %1671 = vmatprep.subr.mxu0 0.0
    %1672 = vmatpush1.msra.mxu0 0.0
    %1673 = vmatprep.subr.mxu0 0.0
    %1674 = vmatpush1.msra.mxu0 0.0
    %1675 = vmatprep.subr.mxu0 0.0
    %1676 = vmatpush1.msra.mxu0 0.0
    %1677 = vmatprep.subr.mxu0 0.0
    %1678 = vmatpush1.msra.mxu0 0.0
    %1679 = vmatprep.subr.mxu0 0.0
    %1680 = vmatpush1.msra.mxu0 0.0
    %1681 = vmatprep.subr.mxu0 0.0
    %1682 = vmatpush1.msra.mxu0 0.0
    %1683 = vmatprep.subr.mxu0 0.0
    %1684 = vmatpush1.msra.mxu0 0.0
    %1685 = vmatprep.subr.mxu0 0.0
    %1686 = vmatpush1.msra.mxu0 0.0
    %1687 = vmatprep.subr.mxu0 0.0
    %1688 = vmatpush1.msra.mxu0 0.0
    %1689 = vmatprep.subr.mxu0 0.0
    %1690 = vmatpush1.msra.mxu0 0.0
    %1691 = vmatprep.subr.mxu0 0.0
    %1692 = vmatpush1.msra.mxu0 0.0
    %1693 = vmatprep.subr.mxu0 0.0
    %1694 = vmatpush1.msra.mxu0 0.0
    %1695 = vmatprep.subr.mxu0 0.0
    %1696 = vmatpush1.msra.mxu0 0.0
    %1697 = vmatprep.subr.mxu0 0.0
    %1698 = vmatpush1.msra.mxu0 0.0
    %1699 = vmatprep.subr.mxu0 0.0
    %1700 = vmatpush1.msra.mxu0 0.0
    %1701 = vmatprep.subr.mxu0 0.0
    %1702 = vmatpush1.msra.mxu0 0.0
    %1703 = vmatprep.subr.mxu0 0.0
    %1704 = vmatpush1.msra.mxu0 0.0
    %1705 = vmatprep.subr.mxu0 0.0
    %1706 = vmatpush1.msra.mxu0 0.0
    %1707 = vmatprep.subr.mxu0 0.0
    %1708 = vmatpush1.msra.mxu0 0.0
    %1709 = vmatprep.subr.mxu0 0.0
    %1710 = vmatpush1.msra.mxu0 0.0
    %1711 = vmatprep.subr.mxu0 0.0
    %1712 = vmatpush1.msra.mxu0 0.0
    %1713 = vmatprep.subr.mxu0 0.0
    %1714 = vmatpush1.msra.mxu0 0.0
    %1715 = vmatprep.subr.mxu0 0.0
    %1716 = vmatpush1.msra.mxu0 0.0
    %1717 = vmatprep.subr.mxu0 0.0
    %1718 = vmatpush1.msra.mxu0 0.0
    %1719 = vmatprep.subr.mxu0 0.0
    %1720 = vmatpush1.msra.mxu0 0.0
    %1721 = vmatprep.subr.mxu0 0.0
    %1722 = vmatpush1.msra.mxu0 0.0
    %1723 = vmatprep.subr.mxu0 0.0
    %1724 = vmatpush1.msra.mxu0 0.0
    %1725 = vmatprep.mubr.f32.mxu0 0.0
    %1726 = vmatmul.mubr.f32.gmra.mrb[0].mxu0 %v1656
    %v1727 = vpop.f32.mrb[0].mxu0
    %v1728 = vadd.f32 %v1653, %v1727
    %v1729 = vpop.f32.mrb[0].mxu0
    %1730 = vmatprep.mubr.f32.mxu0 0.0
    %1731 = vmatmul.mubr.f32.gmra.mrb[0].mxu0 %v1659
    %v1732 = vpop.f32.mrb[0].mxu0
    %v1733 = vadd.f32 %v1653, %v1732
    %v1734 = vpop.f32.mrb[0].mxu0
    %1735 = vdwg.mxu0
    %v1736 = vmul.f32 %v1728, 0.5
    %v1737 = vmul.f32 %v1733, 0.5
    %v1738 = vmul.f32 %v1728, 0.70710677
    %v1739 = vmul.f32 %v1733, 0.70710677
    %v1740 = verf.f32.pop %v1738
    %v1741 = verf.f32.pop %v1739
    %v1742 = vadd.f32 %v1740, 1.0
    %v1743 = vadd.f32 %v1741, 1.0
    %v1744 = vmul.f32 %v1736, %v1742
    %v1745 = vmul.f32 %v1737, %v1743
    %v1746 = vld [vmem:[%s9] sm:$0xff]
    %v1747 = vld [vmem:[%s9 + $0x8] sm:$0xff]
    %v1748 = vld [vmem:[%s9 + $0x10] sm:$0xff]
    %v1749 = vld [vmem:[%s9 + $0x18] sm:$0xff]
    %v1750 = vld [vmem:[%s9 + $0x20] sm:$0xff]
    %v1751 = vld [vmem:[%s9 + $0x28] sm:$0xff]
    %v1752 = vld [vmem:[%s9 + $0x30] sm:$0xff]
    %v1753 = vld [vmem:[%s9 + $0x38] sm:$0xff]
    %v1754 = vld [vmem:[%s9 + $0x40] sm:$0xff]
    %v1755 = vld [vmem:[%s9 + $0x48] sm:$0xff]
    %v1756 = vld [vmem:[%s9 + $0x50] sm:$0xff]
    %v1757 = vld [vmem:[%s9 + $0x58] sm:$0xff]
    %v1758 = vld [vmem:[%s9 + $0x60] sm:$0xff]
    %v1759 = vld [vmem:[%s9 + $0x68] sm:$0xff]
    %v1760 = vld [vmem:[%s9 + $0x70] sm:$0xff]
    %v1761 = vld [vmem:[%s9 + $0x78] sm:$0xff]
    %v1762 = vld [vmem:[%s10] sm:$0x1]
    %v1764 = vlaneseq
    %v1765 = vshrl.u32 %v1764, 7
    %v1766 = vsub.s32 0, %v1765
    %v1767 = vrot.slane %v1762, %v1766
    %1769 = vmatprep.subr.mxu0 0.0
    %1770 = vmatpush1.msra.mxu0 %v1746
    %1771 = vmatprep.subr.mxu0 0.0
    %1772 = vmatpush1.msra.mxu0 %v1747
    %1773 = vmatprep.subr.mxu0 0.0
    %1774 = vmatpush1.msra.mxu0 %v1748
    %1775 = vmatprep.subr.mxu0 0.0
    %1776 = vmatpush1.msra.mxu0 %v1749
    %1777 = vmatprep.subr.mxu0 0.0
    %1778 = vmatpush1.msra.mxu0 %v1750
    %1779 = vmatprep.subr.mxu0 0.0
    %1780 = vmatpush1.msra.mxu0 %v1751
    %1781 = vmatprep.subr.mxu0 0.0
    %1782 = vmatpush1.msra.mxu0 %v1752
    %1783 = vmatprep.subr.mxu0 0.0
    %1784 = vmatpush1.msra.mxu0 %v1753
    %1785 = vmatprep.subr.mxu0 0.0
    %1786 = vmatpush1.msra.mxu0 %v1754
    %1787 = vmatprep.subr.mxu0 0.0
    %1788 = vmatpush1.msra.mxu0 %v1755
    %1789 = vmatprep.subr.mxu0 0.0
    %1790 = vmatpush1.msra.mxu0 %v1756
    %1791 = vmatprep.subr.mxu0 0.0
    %1792 = vmatpush1.msra.mxu0 %v1757
    %1793 = vmatprep.subr.mxu0 0.0
    %1794 = vmatpush1.msra.mxu0 %v1758
    %1795 = vmatprep.subr.mxu0 0.0
    %1796 = vmatpush1.msra.mxu0 %v1759
    %1797 = vmatprep.subr.mxu0 0.0
    %1798 = vmatpush1.msra.mxu0 %v1760
    %1799 = vmatprep.subr.mxu0 0.0
    %1800 = vmatpush1.msra.mxu0 %v1761
    %1801 = vmatprep.subr.mxu0 0.0
    %1802 = vmatpush1.msra.mxu0 0.0
    %1803 = vmatprep.subr.mxu0 0.0
    %1804 = vmatpush1.msra.mxu0 0.0
    %1805 = vmatprep.subr.mxu0 0.0
    %1806 = vmatpush1.msra.mxu0 0.0
    %1807 = vmatprep.subr.mxu0 0.0
    %1808 = vmatpush1.msra.mxu0 0.0
    %1809 = vmatprep.subr.mxu0 0.0
    %1810 = vmatpush1.msra.mxu0 0.0
    %1811 = vmatprep.subr.mxu0 0.0
    %1812 = vmatpush1.msra.mxu0 0.0
    %1813 = vmatprep.subr.mxu0 0.0
    %1814 = vmatpush1.msra.mxu0 0.0
    %1815 = vmatprep.subr.mxu0 0.0
    %1816 = vmatpush1.msra.mxu0 0.0
    %1817 = vmatprep.subr.mxu0 0.0
    %1818 = vmatpush1.msra.mxu0 0.0
    %1819 = vmatprep.subr.mxu0 0.0
    %1820 = vmatpush1.msra.mxu0 0.0
    %1821 = vmatprep.subr.mxu0 0.0
    %1822 = vmatpush1.msra.mxu0 0.0
    %1823 = vmatprep.subr.mxu0 0.0
    %1824 = vmatpush1.msra.mxu0 0.0
    %1825 = vmatprep.subr.mxu0 0.0
    %1826 = vmatpush1.msra.mxu0 0.0
    %1827 = vmatprep.subr.mxu0 0.0
    %1828 = vmatpush1.msra.mxu0 0.0
    %1829 = vmatprep.subr.mxu0 0.0
    %1830 = vmatpush1.msra.mxu0 0.0
    %1831 = vmatprep.subr.mxu0 0.0
    %1832 = vmatpush1.msra.mxu0 0.0
    %1833 = vmatprep.mubr.f32.mxu0 0.0
    %1834 = vmatmul.mubr.f32.gmra.mrb[0].mxu0 %v1744
    %v1835 = vpop.f32.mrb[0].mxu0
    %v1836 = vadd.f32 %v1767, %v1835
    %v1837 = vpop.f32.mrb[0].mxu0
    %1838 = vmatprep.mubr.f32.mxu0 0.0
    %1839 = vmatmul.mubr.f32.gmra.mrb[0].mxu0 %v1745
    %v1840 = vpop.f32.mrb[0].mxu0
    %v1841 = vadd.f32 %v1767, %v1840
    %v1842 = vpop.f32.mrb[0].mxu0
    %1843 = vdwg.mxu0
    %v1844 = vadd.f32 %v1616, %v1836
    %v1845 = vadd.f32 %v1617, %v1841
    %1846 = vst.msk [vmem:[#allocation2] sm:$0xff] %vm45, %v1844
    %1847 = vst.msk [vmem:[#allocation2 + $0x8] sm:$0xff] %vm45, %v1845
    // Predicated region
    $region46: #{tpu_custom_call.1} parent=1 // pred_check
      _
    $region47: #{tpu_custom_call.1} parent=1 // pred_check_branch
      %1849 = sbr.rel (0) target = $region49
    $region48: #{tpu_custom_call.1} parent=1 // pred_region
      %s1851 = ssub.s32 256, 256
      %1852 = vsyncadd [#allocation3], %s1851
      %s1853 = sshll.u32 [#allocation2], 4
      %s1854 = int_to_ptr.vmem [resolvable:$true] %s1853
      %1859 = dma.vmem_to_hbm [thread:$0]  %s1854, 256, %s11, [#allocation3], 128, 128, 8
    $region49: #{tpu_custom_call.1} parent=1 // pred_fallthru
      _
    // Predicated region
    $region50: #{tpu_custom_call.1} parent=1 // pred_check
      _
    $region51: #{tpu_custom_call.1} parent=1 // pred_check_branch
      %1861 = sbr.rel (0) target = $region53
    $region52: #{tpu_custom_call.1} parent=1 // pred_region
      %1862 = dma.done [#allocation3], 256
    $region53: #{tpu_custom_call.1} parent=1 // pred_fallthru
      _
    %1863 = vsyncpa [#allocation3], 1

</llo_original>
